<compile_context>
chip_gen: v5e
topology: v5e:2x2
jax: 0.10.0
libtpu: 0.0.40
codegen_flags: <defaults>
</compile_context>

<pallas_src>
import math

import jax
import jax.numpy as jnp
from jax.experimental import pallas as pl
from jax.experimental.pallas import tpu as pltpu

# ----------------- scaled-down BERT config -----------------
VOCAB = 100
MAX_POS = 16
HIDDEN = 64          # original: 768
NUM_HEADS = 2        # original: 12
HEAD_DIM = HIDDEN // NUM_HEADS
INTERMEDIATE = 128   # original: 3072
NUM_LAYERS = 2       # original: 12
NUM_CLASSES = 2      # fc = nn.Linear(hidden, 2)
LN_EPS = 1e-12
MASK_BIAS = -10000.0


# ----------------- in-kernel helpers -----------------
def _layernorm(v, g, b):
    mu = jnp.mean(v, axis=-1, keepdims=True)
    var = jnp.mean((v - mu) ** 2, axis=-1, keepdims=True)
    return (v - mu) * jax.lax.rsqrt(var + LN_EPS) * g + b


def _gelu(x):
    # TODO(synk): HF BERT uses exact erf-GELU; tanh approximation used here.
    return 0.5 * x * (1.0 + jnp.tanh(0.7978845608028654 * (x + 0.044715 * x * x * x)))


def _qkv_idx(l, which, h):
    # flat index into the stacked (L*3*NUM_HEADS, ...) Q/K/V weight arrays
    return (l * 3 + which) * NUM_HEADS + h


# ----------------- the single fused Pallas kernel -----------------
def bert_fused_kernel(x_ref, mb_ref, emb_ln_ref,
                      wqkv_ref, bqkv_ref, wo_ref, vec_ref,
                      w1_ref, b1_ref, w2_ref, fcw_ref, fcb_ref,
                      o_ref):
    # x_ref: (B*S, H) summed embeddings; mb_ref: (B, 1, S) additive attention-mask bias.
    Bsz, _, S = mb_ref.shape
    N, H = x_ref.shape

    emb_ln = emb_ln_ref[...]                                       # (2, H): gamma, beta
    x = _layernorm(x_ref[...], emb_ln[0:1, :], emb_ln[1:2, :])     # (N, H)
    mb = mb_ref[...]                                               # (B, 1, S)

    # Both encoder layers statically unrolled; everything stays in VMEM / vregs.
    for l in range(NUM_LAYERS):
        vec = vec_ref[l]                      # (6, H): bo, ln1_g, ln1_b, b2, ln2_g, ln2_b
        bo, g1, be1, b2, g2, be2 = [vec[i:i + 1, :] for i in range(6)]

        # ---- self-attention: per-head weight blocks, no activation lane slicing ----
        attn = bo                                                  # (1, H), broadcasts
        for h in range(NUM_HEADS):
            qh = jnp.dot(x, wqkv_ref[_qkv_idx(l, 0, h)],
                         preferred_element_type=jnp.float32) + bqkv_ref[_qkv_idx(l, 0, h)]
            kh = jnp.dot(x, wqkv_ref[_qkv_idx(l, 1, h)],
                         preferred_element_type=jnp.float32) + bqkv_ref[_qkv_idx(l, 1, h)]
            vh = jnp.dot(x, wqkv_ref[_qkv_idx(l, 2, h)],
                         preferred_element_type=jnp.float32) + bqkv_ref[_qkv_idx(l, 2, h)]
            # (B*S, HD) -> (B, S, HD): only splits the sublane-major dim (8-aligned), free.
            q3 = qh.reshape(Bsz, S, HEAD_DIM)
            k3 = kh.reshape(Bsz, S, HEAD_DIM)
            v3 = vh.reshape(Bsz, S, HEAD_DIM)
            # 1/sqrt(HEAD_DIM) is pre-folded into Wq/bq at pack time.
            s = jnp.einsum("bqd,bkd->bqk", q3, k3,
                           preferred_element_type=jnp.float32) + mb      # (B, S, S)
            s = s - jnp.max(s, axis=-1, keepdims=True)
            p = jnp.exp(s)
            p = p * pl.reciprocal(jnp.sum(p, axis=-1, keepdims=True), approx=True)
            ctx = jnp.einsum("bqk,bkd->bqd", p, v3,
                             preferred_element_type=jnp.float32).reshape(N, HEAD_DIM)
            # accumulate output projection per head (Wo split by input rows) -> no concat
            attn = attn + jnp.dot(ctx, wo_ref[l * NUM_HEADS + h],
                                  preferred_element_type=jnp.float32)

        h1 = _layernorm(x + attn, g1, be1)

        # ---- feed-forward ----
        ff = _gelu(jnp.dot(h1, w1_ref[l], preferred_element_type=jnp.float32) + b1_ref[l])
        ff = jnp.dot(ff, w2_ref[l], preferred_element_type=jnp.float32) + b2
        x = _layernorm(h1 + ff, g2, be2)

    # ---- fused classifier head on the CLS rows (row b*S of the flattened states) ----
    cls = jnp.concatenate([x[b * S:b * S + 1, :] for b in range(Bsz)], axis=0)  # (B, H)
    o_ref[...] = jnp.dot(cls, fcw_ref[...],
                         preferred_element_type=jnp.float32) + fcb_ref[...]


# ----------------- deterministic parameter init (natural layout) -----------------
def init_params(key):
    def nrm(k, shape, scale=0.02):
        return scale * jax.random.normal(k, shape, jnp.float32)

    keys = iter(jax.random.split(key, 8 + NUM_LAYERS * 8))
    params = {
        "word_emb": nrm(next(keys), (VOCAB, HIDDEN)),
        "pos_emb": nrm(next(keys), (MAX_POS, HIDDEN)),
        "type_emb": nrm(next(keys), (2, HIDDEN)),
        "emb_ln_g": jnp.ones((HIDDEN,), jnp.float32),
        "emb_ln_b": jnp.zeros((HIDDEN,), jnp.float32),
        "fc_w": nrm(next(keys), (HIDDEN, NUM_CLASSES)),
        "fc_b": jnp.zeros((NUM_CLASSES,), jnp.float32),
        "layers": [],
    }
    for _ in range(NUM_LAYERS):
        lw = dict(
            wq=nrm(next(keys), (HIDDEN, HIDDEN)), bq=jnp.zeros((HIDDEN,), jnp.float32),
            wk=nrm(next(keys), (HIDDEN, HIDDEN)), bk=jnp.zeros((HIDDEN,), jnp.float32),
            wv=nrm(next(keys), (HIDDEN, HIDDEN)), bv=jnp.zeros((HIDDEN,), jnp.float32),
            wo=nrm(next(keys), (HIDDEN, HIDDEN)), bo=jnp.zeros((HIDDEN,), jnp.float32),
            ln1_g=jnp.ones((HIDDEN,), jnp.float32), ln1_b=jnp.zeros((HIDDEN,), jnp.float32),
            w1=nrm(next(keys), (HIDDEN, INTERMEDIATE)), b1=jnp.zeros((INTERMEDIATE,), jnp.float32),
            w2=nrm(next(keys), (INTERMEDIATE, HIDDEN)), b2=jnp.zeros((HIDDEN,), jnp.float32),
            ln2_g=jnp.ones((HIDDEN,), jnp.float32), ln2_b=jnp.zeros((HIDDEN,), jnp.float32),
        )
        params["layers"].append(lw)
    return params


# ----------------- repack weights for the fused kernel -----------------
def pack_params(params):
    """Stack per-layer weights into a few contiguous tensors, split Q/K/V/O per head so
    the kernel never lane-slices activations, and fold 1/sqrt(HEAD_DIM) into Wq/bq."""
    scale = 1.0 / math.sqrt(HEAD_DIM)

    def out_heads(w):   # (H, H) -> (NUM_HEADS, H, HEAD_DIM): output columns grouped by head
        return jnp.transpose(w.reshape(HIDDEN, NUM_HEADS, HEAD_DIM), (1, 0, 2))

    wqkv, bqkv, wo, vec_h, w1, b1, w2 = [], [], [], [], [], [], []
    for lw in params["layers"]:
        wqkv += [out_heads(lw["wq"]) * scale, out_heads(lw["wk"]), out_heads(lw["wv"])]
        bqkv += [(lw["bq"] * scale).reshape(NUM_HEADS, 1, HEAD_DIM),
                 lw["bk"].reshape(NUM_HEADS, 1, HEAD_DIM),
                 lw["bv"].reshape(NUM_HEADS, 1, HEAD_DIM)]
        wo.append(lw["wo"].reshape(NUM_HEADS, HEAD_DIM, HIDDEN))   # Wo rows grouped by head
        vec_h.append(jnp.stack([lw["bo"], lw["ln1_g"], lw["ln1_b"],
                                lw["b2"], lw["ln2_g"], lw["ln2_b"]]))
        w1.append(lw["w1"])
        b1.append(lw["b1"].reshape(1, INTERMEDIATE))
        w2.append(lw["w2"])

    return {
        "word_emb": params["word_emb"],
        "pos_emb": params["pos_emb"],
        "type_emb": params["type_emb"],
        "emb_ln": jnp.stack([params["emb_ln_g"], params["emb_ln_b"]]),   # (2, H)
        "wqkv": jnp.concatenate(wqkv, axis=0),    # (L*3*NH, H, HD)
        "bqkv": jnp.concatenate(bqkv, axis=0),    # (L*3*NH, 1, HD)
        "wo": jnp.concatenate(wo, axis=0),        # (L*NH, HD, H)
        "vec_h": jnp.stack(vec_h),                # (L, 6, H)
        "w1": jnp.stack(w1),                      # (L, H, I)
        "b1": jnp.stack(b1),                      # (L, 1, I)
        "w2": jnp.stack(w2),                      # (L, I, H)
        "fc_w": params["fc_w"],                   # (H, 2)
        "fc_b": params["fc_b"].reshape(1, NUM_CLASSES),
    }


# ----------------- forward (mirrors BERTClassifier.forward) -----------------
@jax.jit
def bert_classifier_forward(packed, tokens, masks):
    B, S = tokens.shape
    # Embedding lookup (gather) is glue in plain JAX; everything else runs in Pallas.
    emb = (jnp.take(packed["word_emb"], tokens, axis=0)
           + packed["pos_emb"][None, :S, :]
           + packed["type_emb"][0][None, None, :])                 # token_type_ids == 0
    x2 = emb.reshape(B * S, HIDDEN)
    mask_bias = ((1.0 - masks.astype(jnp.float32)) * MASK_BIAS)[:, None, :]   # (B, 1, S)

    args = (x2, mask_bias, packed["emb_ln"],
            packed["wqkv"], packed["bqkv"], packed["wo"], packed["vec_h"],
            packed["w1"], packed["b1"], packed["w2"],
            packed["fc_w"], packed["fc_b"])
    return pl.pallas_call(
        bert_fused_kernel,
        out_shape=jax.ShapeDtypeStruct((B, NUM_CLASSES), jnp.float32),
        in_specs=[pl.BlockSpec(memory_space=pltpu.MemorySpace.VMEM)] * len(args),
        out_specs=pl.BlockSpec(memory_space=pltpu.MemorySpace.VMEM),
    )(*args)


if __name__ == "__main__":
    root = jax.random.PRNGKey(0)
    pkey, tkey = jax.random.split(root)
    packed = pack_params(init_params(pkey))

    B, S = 2, 8
    tokens = jax.random.randint(tkey, (B, S), 0, VOCAB, dtype=jnp.int32)
    masks = jnp.array([[1, 1, 1, 1, 1, 1, 1, 1],
                       [1, 1, 1, 1, 1, 1, 0, 0]], dtype=jnp.float32)

    logits = bert_classifier_forward(packed, tokens, masks)
    jax.block_until_ready(logits)
    assert logits.shape == (B, NUM_CLASSES) and logits.dtype == jnp.float32
    assert bool(jnp.all(jnp.isfinite(logits)))
    print("KERNEL_OK")
</pallas_src>

<mosaic_0001>
module attributes {stable_mosaic.version = 11 : i64} {
  func.func @bert_fused_kernel(%arg0: memref<16x64xf32, #tpu.memory_space<vmem>>, %arg1: memref<2x1x8xf32, #tpu.memory_space<vmem>>, %arg2: memref<2x64xf32, #tpu.memory_space<vmem>>, %arg3: memref<12x64x32xf32, #tpu.memory_space<vmem>>, %arg4: memref<12x1x32xf32, #tpu.memory_space<vmem>>, %arg5: memref<4x32x64xf32, #tpu.memory_space<vmem>>, %arg6: memref<2x6x64xf32, #tpu.memory_space<vmem>>, %arg7: memref<2x64x128xf32, #tpu.memory_space<vmem>>, %arg8: memref<2x1x128xf32, #tpu.memory_space<vmem>>, %arg9: memref<2x128x64xf32, #tpu.memory_space<vmem>>, %arg10: memref<64x2xf32, #tpu.memory_space<vmem>>, %arg11: memref<1x2xf32, #tpu.memory_space<vmem>>, %arg12: memref<2x2xf32, #tpu.memory_space<vmem>>) attributes {dimension_semantics = [], scalar_prefetch = 0 : i64, scratch_operands = 0 : i64, tpu.core_type = #tpu.core_type<tc>} {
    %c0 = arith.constant 0 : index
    %c0_0 = arith.constant 0 : index
    %0 = vector.load %arg2[%c0, %c0_0] : memref<2x64xf32, #tpu.memory_space<vmem>>, vector<2x64xf32>
    %c0_1 = arith.constant 0 : index
    %c0_2 = arith.constant 0 : index
    %1 = vector.load %arg0[%c0_1, %c0_2] : memref<16x64xf32, #tpu.memory_space<vmem>>, vector<16x64xf32>
    %2 = vector.extract_strided_slice %0 {offsets = [0, 0], sizes = [1, 64], strides = [1, 1]} : vector<2x64xf32> to vector<1x64xf32>
    %3 = vector.extract_strided_slice %0 {offsets = [1, 0], sizes = [1, 64], strides = [1, 1]} : vector<2x64xf32> to vector<1x64xf32>
    %cst = arith.constant dense<0.000000e+00> : vector<16xf32>
    %4 = vector.multi_reduction <add>, %1, %cst [1] : vector<16x64xf32> to vector<16xf32>
    %5 = vector.shape_cast %4 : vector<16xf32> to vector<16x1xf32>
    %cst_3 = arith.constant 6.400000e+01 : f32
    %6 = vector.broadcast %cst_3 : f32 to vector<16x1xf32>
    %7 = arith.divf %5, %6 : vector<16x1xf32>
    %8 = vector.broadcast %7 : vector<16x1xf32> to vector<16x64xf32>
    %9 = arith.subf %1, %8 : vector<16x64xf32>
    %10 = arith.mulf %9, %9 : vector<16x64xf32>
    %cst_4 = arith.constant dense<0.000000e+00> : vector<16xf32>
    %11 = vector.multi_reduction <add>, %10, %cst_4 [1] : vector<16x64xf32> to vector<16xf32>
    %12 = vector.shape_cast %11 : vector<16xf32> to vector<16x1xf32>
    %cst_5 = arith.constant 6.400000e+01 : f32
    %13 = vector.broadcast %cst_5 : f32 to vector<16x1xf32>
    %14 = arith.divf %12, %13 : vector<16x1xf32>
    %15 = vector.broadcast %7 : vector<16x1xf32> to vector<16x64xf32>
    %16 = arith.subf %1, %15 : vector<16x64xf32>
    %cst_6 = arith.constant 9.99999996E-13 : f32
    %17 = vector.broadcast %cst_6 : f32 to vector<16x1xf32>
    %18 = arith.addf %14, %17 : vector<16x1xf32>
    %19 = math.rsqrt %18 : vector<16x1xf32>
    %20 = vector.broadcast %19 : vector<16x1xf32> to vector<16x64xf32>
    %21 = arith.mulf %16, %20 : vector<16x64xf32>
    %22 = vector.broadcast %2 : vector<1x64xf32> to vector<16x64xf32>
    %23 = arith.mulf %21, %22 : vector<16x64xf32>
    %24 = vector.broadcast %3 : vector<1x64xf32> to vector<16x64xf32>
    %25 = arith.addf %23, %24 : vector<16x64xf32>
    %c0_7 = arith.constant 0 : index
    %c0_8 = arith.constant 0 : index
    %c0_9 = arith.constant 0 : index
    %26 = vector.load %arg1[%c0_7, %c0_8, %c0_9] : memref<2x1x8xf32, #tpu.memory_space<vmem>>, vector<2x1x8xf32>
    %c0_10 = arith.constant 0 : index
    %c0_11 = arith.constant 0 : index
    %c0_12 = arith.constant 0 : index
    %27 = vector.load %arg6[%c0_10, %c0_11, %c0_12] : memref<2x6x64xf32, #tpu.memory_space<vmem>>, vector<1x6x64xf32>
    %28 = vector.shape_cast %27 : vector<1x6x64xf32> to vector<6x64xf32>
    %29 = vector.extract_strided_slice %28 {offsets = [0, 0], sizes = [1, 64], strides = [1, 1]} : vector<6x64xf32> to vector<1x64xf32>
    %30 = vector.extract_strided_slice %28 {offsets = [1, 0], sizes = [1, 64], strides = [1, 1]} : vector<6x64xf32> to vector<1x64xf32>
    %31 = vector.extract_strided_slice %28 {offsets = [2, 0], sizes = [1, 64], strides = [1, 1]} : vector<6x64xf32> to vector<1x64xf32>
    %32 = vector.extract_strided_slice %28 {offsets = [3, 0], sizes = [1, 64], strides = [1, 1]} : vector<6x64xf32> to vector<1x64xf32>
    %33 = vector.extract_strided_slice %28 {offsets = [4, 0], sizes = [1, 64], strides = [1, 1]} : vector<6x64xf32> to vector<1x64xf32>
    %34 = vector.extract_strided_slice %28 {offsets = [5, 0], sizes = [1, 64], strides = [1, 1]} : vector<6x64xf32> to vector<1x64xf32>
    %c0_13 = arith.constant 0 : index
    %c0_14 = arith.constant 0 : index
    %c0_15 = arith.constant 0 : index
    %35 = vector.load %arg3[%c0_13, %c0_14, %c0_15] : memref<12x64x32xf32, #tpu.memory_space<vmem>>, vector<1x64x32xf32>
    %36 = vector.shape_cast %35 : vector<1x64x32xf32> to vector<64x32xf32>
    %cst_16 = arith.constant dense<0.000000e+00> : vector<16x32xf32>
    %37 = tpu.matmul %25, %36, %cst_16 {dimension_numbers = #tpu.dot_dimension_numbers<[1], [0], [0], [1], [0, 0, 1, 1], [], []>} : vector<16x64xf32>, vector<64x32xf32>, vector<16x32xf32> -> vector<16x32xf32>
    %c0_17 = arith.constant 0 : index
    %c0_18 = arith.constant 0 : index
    %c0_19 = arith.constant 0 : index
    %38 = vector.load %arg4[%c0_17, %c0_18, %c0_19] : memref<12x1x32xf32, #tpu.memory_space<vmem>>, vector<1x1x32xf32>
    %39 = vector.shape_cast %38 : vector<1x1x32xf32> to vector<1x32xf32>
    %40 = vector.broadcast %39 : vector<1x32xf32> to vector<16x32xf32>
    %41 = arith.addf %37, %40 : vector<16x32xf32>
    %c2 = arith.constant 2 : index
    %c0_20 = arith.constant 0 : index
    %c0_21 = arith.constant 0 : index
    %42 = vector.load %arg3[%c2, %c0_20, %c0_21] : memref<12x64x32xf32, #tpu.memory_space<vmem>>, vector<1x64x32xf32>
    %43 = vector.shape_cast %42 : vector<1x64x32xf32> to vector<64x32xf32>
    %cst_22 = arith.constant dense<0.000000e+00> : vector<16x32xf32>
    %44 = tpu.matmul %25, %43, %cst_22 {dimension_numbers = #tpu.dot_dimension_numbers<[1], [0], [0], [1], [0, 0, 1, 1], [], []>} : vector<16x64xf32>, vector<64x32xf32>, vector<16x32xf32> -> vector<16x32xf32>
    %c2_23 = arith.constant 2 : index
    %c0_24 = arith.constant 0 : index
    %c0_25 = arith.constant 0 : index
    %45 = vector.load %arg4[%c2_23, %c0_24, %c0_25] : memref<12x1x32xf32, #tpu.memory_space<vmem>>, vector<1x1x32xf32>
    %46 = vector.shape_cast %45 : vector<1x1x32xf32> to vector<1x32xf32>
    %47 = vector.broadcast %46 : vector<1x32xf32> to vector<16x32xf32>
    %48 = arith.addf %44, %47 : vector<16x32xf32>
    %c4 = arith.constant 4 : index
    %c0_26 = arith.constant 0 : index
    %c0_27 = arith.constant 0 : index
    %49 = vector.load %arg3[%c4, %c0_26, %c0_27] : memref<12x64x32xf32, #tpu.memory_space<vmem>>, vector<1x64x32xf32>
    %50 = vector.shape_cast %49 : vector<1x64x32xf32> to vector<64x32xf32>
    %cst_28 = arith.constant dense<0.000000e+00> : vector<16x32xf32>
    %51 = tpu.matmul %25, %50, %cst_28 {dimension_numbers = #tpu.dot_dimension_numbers<[1], [0], [0], [1], [0, 0, 1, 1], [], []>} : vector<16x64xf32>, vector<64x32xf32>, vector<16x32xf32> -> vector<16x32xf32>
    %c4_29 = arith.constant 4 : index
    %c0_30 = arith.constant 0 : index
    %c0_31 = arith.constant 0 : index
    %52 = vector.load %arg4[%c4_29, %c0_30, %c0_31] : memref<12x1x32xf32, #tpu.memory_space<vmem>>, vector<1x1x32xf32>
    %53 = vector.shape_cast %52 : vector<1x1x32xf32> to vector<1x32xf32>
    %54 = vector.broadcast %53 : vector<1x32xf32> to vector<16x32xf32>
    %55 = arith.addf %51, %54 : vector<16x32xf32>
    %56 = vector.shape_cast %41 : vector<16x32xf32> to vector<2x8x32xf32>
    %57 = vector.shape_cast %48 : vector<16x32xf32> to vector<2x8x32xf32>
    %58 = vector.shape_cast %55 : vector<16x32xf32> to vector<2x8x32xf32>
    "tpu.trace_start"() <{level = 10 : i32, message = "bqd,bkd->bqk"}> : () -> ()
    %cst_32 = arith.constant dense<0.000000e+00> : vector<2x8x8xf32>
    %59 = tpu.matmul %56, %57, %cst_32 {dimension_numbers = #tpu.dot_dimension_numbers<[2], [2], [1], [1], [0, 0, 0, 1, 1, 1], [0], [0]>} : vector<2x8x32xf32>, vector<2x8x32xf32>, vector<2x8x8xf32> -> vector<2x8x8xf32>
    "tpu.trace_stop"() : () -> ()
    %60 = vector.broadcast %26 : vector<2x1x8xf32> to vector<2x8x8xf32>
    %61 = arith.addf %59, %60 : vector<2x8x8xf32>
    %cst_33 = arith.constant dense<0xFF800000> : vector<2x8xf32>
    %62 = vector.multi_reduction <maximumf>, %61, %cst_33 [2] : vector<2x8x8xf32> to vector<2x8xf32>
    %63 = vector.shape_cast %62 : vector<2x8xf32> to vector<2x8x1xf32>
    %64 = vector.broadcast %63 : vector<2x8x1xf32> to vector<2x8x8xf32>
    %65 = arith.subf %61, %64 : vector<2x8x8xf32>
    %66 = math.exp %65 : vector<2x8x8xf32>
    %cst_34 = arith.constant dense<0.000000e+00> : vector<2x8xf32>
    %67 = vector.multi_reduction <add>, %66, %cst_34 [2] : vector<2x8x8xf32> to vector<2x8xf32>
    %68 = vector.shape_cast %67 : vector<2x8xf32> to vector<2x8x1xf32>
    %69 = tpu.reciprocal %68 {approx = true} : vector<2x8x1xf32> -> vector<2x8x1xf32>
    %70 = vector.broadcast %69 : vector<2x8x1xf32> to vector<2x8x8xf32>
    %71 = arith.mulf %66, %70 : vector<2x8x8xf32>
    "tpu.trace_start"() <{level = 10 : i32, message = "bqk,bkd->bqd"}> : () -> ()
    %cst_35 = arith.constant dense<0.000000e+00> : vector<2x8x32xf32>
    %72 = tpu.matmul %71, %58, %cst_35 {dimension_numbers = #tpu.dot_dimension_numbers<[2], [1], [1], [2], [0, 0, 0, 1, 1, 2], [0], [0]>} : vector<2x8x8xf32>, vector<2x8x32xf32>, vector<2x8x32xf32> -> vector<2x8x32xf32>
    "tpu.trace_stop"() : () -> ()
    %73 = vector.shape_cast %72 : vector<2x8x32xf32> to vector<16x32xf32>
    %c0_36 = arith.constant 0 : index
    %c0_37 = arith.constant 0 : index
    %c0_38 = arith.constant 0 : index
    %74 = vector.load %arg5[%c0_36, %c0_37, %c0_38] : memref<4x32x64xf32, #tpu.memory_space<vmem>>, vector<1x32x64xf32>
    %75 = vector.shape_cast %74 : vector<1x32x64xf32> to vector<32x64xf32>
    %cst_39 = arith.constant dense<0.000000e+00> : vector<16x64xf32>
    %76 = tpu.matmul %73, %75, %cst_39 {dimension_numbers = #tpu.dot_dimension_numbers<[1], [0], [0], [1], [0, 0, 1, 1], [], []>} : vector<16x32xf32>, vector<32x64xf32>, vector<16x64xf32> -> vector<16x64xf32>
    %77 = vector.broadcast %29 : vector<1x64xf32> to vector<16x64xf32>
    %78 = arith.addf %77, %76 : vector<16x64xf32>
    %c1 = arith.constant 1 : index
    %c0_40 = arith.constant 0 : index
    %c0_41 = arith.constant 0 : index
    %79 = vector.load %arg3[%c1, %c0_40, %c0_41] : memref<12x64x32xf32, #tpu.memory_space<vmem>>, vector<1x64x32xf32>
    %80 = vector.shape_cast %79 : vector<1x64x32xf32> to vector<64x32xf32>
    %cst_42 = arith.constant dense<0.000000e+00> : vector<16x32xf32>
    %81 = tpu.matmul %25, %80, %cst_42 {dimension_numbers = #tpu.dot_dimension_numbers<[1], [0], [0], [1], [0, 0, 1, 1], [], []>} : vector<16x64xf32>, vector<64x32xf32>, vector<16x32xf32> -> vector<16x32xf32>
    %c1_43 = arith.constant 1 : index
    %c0_44 = arith.constant 0 : index
    %c0_45 = arith.constant 0 : index
    %82 = vector.load %arg4[%c1_43, %c0_44, %c0_45] : memref<12x1x32xf32, #tpu.memory_space<vmem>>, vector<1x1x32xf32>
    %83 = vector.shape_cast %82 : vector<1x1x32xf32> to vector<1x32xf32>
    %84 = vector.broadcast %83 : vector<1x32xf32> to vector<16x32xf32>
    %85 = arith.addf %81, %84 : vector<16x32xf32>
    %c3 = arith.constant 3 : index
    %c0_46 = arith.constant 0 : index
    %c0_47 = arith.constant 0 : index
    %86 = vector.load %arg3[%c3, %c0_46, %c0_47] : memref<12x64x32xf32, #tpu.memory_space<vmem>>, vector<1x64x32xf32>
    %87 = vector.shape_cast %86 : vector<1x64x32xf32> to vector<64x32xf32>
    %cst_48 = arith.constant dense<0.000000e+00> : vector<16x32xf32>
    %88 = tpu.matmul %25, %87, %cst_48 {dimension_numbers = #tpu.dot_dimension_numbers<[1], [0], [0], [1], [0, 0, 1, 1], [], []>} : vector<16x64xf32>, vector<64x32xf32>, vector<16x32xf32> -> vector<16x32xf32>
    %c3_49 = arith.constant 3 : index
    %c0_50 = arith.constant 0 : index
    %c0_51 = arith.constant 0 : index
    %89 = vector.load %arg4[%c3_49, %c0_50, %c0_51] : memref<12x1x32xf32, #tpu.memory_space<vmem>>, vector<1x1x32xf32>
    %90 = vector.shape_cast %89 : vector<1x1x32xf32> to vector<1x32xf32>
    %91 = vector.broadcast %90 : vector<1x32xf32> to vector<16x32xf32>
    %92 = arith.addf %88, %91 : vector<16x32xf32>
    %c5 = arith.constant 5 : index
    %c0_52 = arith.constant 0 : index
    %c0_53 = arith.constant 0 : index
    %93 = vector.load %arg3[%c5, %c0_52, %c0_53] : memref<12x64x32xf32, #tpu.memory_space<vmem>>, vector<1x64x32xf32>
    %94 = vector.shape_cast %93 : vector<1x64x32xf32> to vector<64x32xf32>
    %cst_54 = arith.constant dense<0.000000e+00> : vector<16x32xf32>
    %95 = tpu.matmul %25, %94, %cst_54 {dimension_numbers = #tpu.dot_dimension_numbers<[1], [0], [0], [1], [0, 0, 1, 1], [], []>} : vector<16x64xf32>, vector<64x32xf32>, vector<16x32xf32> -> vector<16x32xf32>
    %c5_55 = arith.constant 5 : index
    %c0_56 = arith.constant 0 : index
    %c0_57 = arith.constant 0 : index
    %96 = vector.load %arg4[%c5_55, %c0_56, %c0_57] : memref<12x1x32xf32, #tpu.memory_space<vmem>>, vector<1x1x32xf32>
    %97 = vector.shape_cast %96 : vector<1x1x32xf32> to vector<1x32xf32>
    %98 = vector.broadcast %97 : vector<1x32xf32> to vector<16x32xf32>
    %99 = arith.addf %95, %98 : vector<16x32xf32>
    %100 = vector.shape_cast %85 : vector<16x32xf32> to vector<2x8x32xf32>
    %101 = vector.shape_cast %92 : vector<16x32xf32> to vector<2x8x32xf32>
    %102 = vector.shape_cast %99 : vector<16x32xf32> to vector<2x8x32xf32>
    "tpu.trace_start"() <{level = 10 : i32, message = "bqd,bkd->bqk"}> : () -> ()
    %cst_58 = arith.constant dense<0.000000e+00> : vector<2x8x8xf32>
    %103 = tpu.matmul %100, %101, %cst_58 {dimension_numbers = #tpu.dot_dimension_numbers<[2], [2], [1], [1], [0, 0, 0, 1, 1, 1], [0], [0]>} : vector<2x8x32xf32>, vector<2x8x32xf32>, vector<2x8x8xf32> -> vector<2x8x8xf32>
    "tpu.trace_stop"() : () -> ()
    %104 = vector.broadcast %26 : vector<2x1x8xf32> to vector<2x8x8xf32>
    %105 = arith.addf %103, %104 : vector<2x8x8xf32>
    %cst_59 = arith.constant dense<0xFF800000> : vector<2x8xf32>
    %106 = vector.multi_reduction <maximumf>, %105, %cst_59 [2] : vector<2x8x8xf32> to vector<2x8xf32>
    %107 = vector.shape_cast %106 : vector<2x8xf32> to vector<2x8x1xf32>
    %108 = vector.broadcast %107 : vector<2x8x1xf32> to vector<2x8x8xf32>
    %109 = arith.subf %105, %108 : vector<2x8x8xf32>
    %110 = math.exp %109 : vector<2x8x8xf32>
    %cst_60 = arith.constant dense<0.000000e+00> : vector<2x8xf32>
    %111 = vector.multi_reduction <add>, %110, %cst_60 [2] : vector<2x8x8xf32> to vector<2x8xf32>
    %112 = vector.shape_cast %111 : vector<2x8xf32> to vector<2x8x1xf32>
    %113 = tpu.reciprocal %112 {approx = true} : vector<2x8x1xf32> -> vector<2x8x1xf32>
    %114 = vector.broadcast %113 : vector<2x8x1xf32> to vector<2x8x8xf32>
    %115 = arith.mulf %110, %114 : vector<2x8x8xf32>
    "tpu.trace_start"() <{level = 10 : i32, message = "bqk,bkd->bqd"}> : () -> ()
    %cst_61 = arith.constant dense<0.000000e+00> : vector<2x8x32xf32>
    %116 = tpu.matmul %115, %102, %cst_61 {dimension_numbers = #tpu.dot_dimension_numbers<[2], [1], [1], [2], [0, 0, 0, 1, 1, 2], [0], [0]>} : vector<2x8x8xf32>, vector<2x8x32xf32>, vector<2x8x32xf32> -> vector<2x8x32xf32>
    "tpu.trace_stop"() : () -> ()
    %117 = vector.shape_cast %116 : vector<2x8x32xf32> to vector<16x32xf32>
    %c1_62 = arith.constant 1 : index
    %c0_63 = arith.constant 0 : index
    %c0_64 = arith.constant 0 : index
    %118 = vector.load %arg5[%c1_62, %c0_63, %c0_64] : memref<4x32x64xf32, #tpu.memory_space<vmem>>, vector<1x32x64xf32>
    %119 = vector.shape_cast %118 : vector<1x32x64xf32> to vector<32x64xf32>
    %cst_65 = arith.constant dense<0.000000e+00> : vector<16x64xf32>
    %120 = tpu.matmul %117, %119, %cst_65 {dimension_numbers = #tpu.dot_dimension_numbers<[1], [0], [0], [1], [0, 0, 1, 1], [], []>} : vector<16x32xf32>, vector<32x64xf32>, vector<16x64xf32> -> vector<16x64xf32>
    %121 = arith.addf %78, %120 : vector<16x64xf32>
    %122 = arith.addf %25, %121 : vector<16x64xf32>
    %cst_66 = arith.constant dense<0.000000e+00> : vector<16xf32>
    %123 = vector.multi_reduction <add>, %122, %cst_66 [1] : vector<16x64xf32> to vector<16xf32>
    %124 = vector.shape_cast %123 : vector<16xf32> to vector<16x1xf32>
    %cst_67 = arith.constant 6.400000e+01 : f32
    %125 = vector.broadcast %cst_67 : f32 to vector<16x1xf32>
    %126 = arith.divf %124, %125 : vector<16x1xf32>
    %127 = vector.broadcast %126 : vector<16x1xf32> to vector<16x64xf32>
    %128 = arith.subf %122, %127 : vector<16x64xf32>
    %129 = arith.mulf %128, %128 : vector<16x64xf32>
    %cst_68 = arith.constant dense<0.000000e+00> : vector<16xf32>
    %130 = vector.multi_reduction <add>, %129, %cst_68 [1] : vector<16x64xf32> to vector<16xf32>
    %131 = vector.shape_cast %130 : vector<16xf32> to vector<16x1xf32>
    %cst_69 = arith.constant 6.400000e+01 : f32
    %132 = vector.broadcast %cst_69 : f32 to vector<16x1xf32>
    %133 = arith.divf %131, %132 : vector<16x1xf32>
    %134 = vector.broadcast %126 : vector<16x1xf32> to vector<16x64xf32>
    %135 = arith.subf %122, %134 : vector<16x64xf32>
    %cst_70 = arith.constant 9.99999996E-13 : f32
    %136 = vector.broadcast %cst_70 : f32 to vector<16x1xf32>
    %137 = arith.addf %133, %136 : vector<16x1xf32>
    %138 = math.rsqrt %137 : vector<16x1xf32>
    %139 = vector.broadcast %138 : vector<16x1xf32> to vector<16x64xf32>
    %140 = arith.mulf %135, %139 : vector<16x64xf32>
    %141 = vector.broadcast %30 : vector<1x64xf32> to vector<16x64xf32>
    %142 = arith.mulf %140, %141 : vector<16x64xf32>
    %143 = vector.broadcast %31 : vector<1x64xf32> to vector<16x64xf32>
    %144 = arith.addf %142, %143 : vector<16x64xf32>
    %c0_71 = arith.constant 0 : index
    %c0_72 = arith.constant 0 : index
    %c0_73 = arith.constant 0 : index
    %145 = vector.load %arg7[%c0_71, %c0_72, %c0_73] : memref<2x64x128xf32, #tpu.memory_space<vmem>>, vector<1x64x128xf32>
    %146 = vector.shape_cast %145 : vector<1x64x128xf32> to vector<64x128xf32>
    %cst_74 = arith.constant dense<0.000000e+00> : vector<16x128xf32>
    %147 = tpu.matmul %144, %146, %cst_74 {dimension_numbers = #tpu.dot_dimension_numbers<[1], [0], [0], [1], [0, 0, 1, 1], [], []>} : vector<16x64xf32>, vector<64x128xf32>, vector<16x128xf32> -> vector<16x128xf32>
    %c0_75 = arith.constant 0 : index
    %c0_76 = arith.constant 0 : index
    %c0_77 = arith.constant 0 : index
    %148 = vector.load %arg8[%c0_75, %c0_76, %c0_77] : memref<2x1x128xf32, #tpu.memory_space<vmem>>, vector<1x1x128xf32>
    %149 = vector.shape_cast %148 : vector<1x1x128xf32> to vector<1x128xf32>
    %150 = vector.broadcast %149 : vector<1x128xf32> to vector<16x128xf32>
    %151 = arith.addf %147, %150 : vector<16x128xf32>
    %cst_78 = arith.constant 5.000000e-01 : f32
    %152 = vector.broadcast %cst_78 : f32 to vector<16x128xf32>
    %153 = arith.mulf %152, %151 : vector<16x128xf32>
    %cst_79 = arith.constant 4.471500e-02 : f32
    %154 = vector.broadcast %cst_79 : f32 to vector<16x128xf32>
    %155 = arith.mulf %154, %151 : vector<16x128xf32>
    %156 = arith.mulf %155, %151 : vector<16x128xf32>
    %157 = arith.mulf %156, %151 : vector<16x128xf32>
    %158 = arith.addf %151, %157 : vector<16x128xf32>
    %cst_80 = arith.constant 0.797884583 : f32
    %159 = vector.broadcast %cst_80 : f32 to vector<16x128xf32>
    %160 = arith.mulf %159, %158 : vector<16x128xf32>
    %161 = math.tanh %160 : vector<16x128xf32>
    %cst_81 = arith.constant 1.000000e+00 : f32
    %162 = vector.broadcast %cst_81 : f32 to vector<16x128xf32>
    %163 = arith.addf %162, %161 : vector<16x128xf32>
    %164 = arith.mulf %153, %163 : vector<16x128xf32>
    %c0_82 = arith.constant 0 : index
    %c0_83 = arith.constant 0 : index
    %c0_84 = arith.constant 0 : index
    %165 = vector.load %arg9[%c0_82, %c0_83, %c0_84] : memref<2x128x64xf32, #tpu.memory_space<vmem>>, vector<1x128x64xf32>
    %166 = vector.shape_cast %165 : vector<1x128x64xf32> to vector<128x64xf32>
    %cst_85 = arith.constant dense<0.000000e+00> : vector<16x64xf32>
    %167 = tpu.matmul %164, %166, %cst_85 {dimension_numbers = #tpu.dot_dimension_numbers<[1], [0], [0], [1], [0, 0, 1, 1], [], []>} : vector<16x128xf32>, vector<128x64xf32>, vector<16x64xf32> -> vector<16x64xf32>
    %168 = vector.broadcast %32 : vector<1x64xf32> to vector<16x64xf32>
    %169 = arith.addf %167, %168 : vector<16x64xf32>
    %170 = arith.addf %144, %169 : vector<16x64xf32>
    %cst_86 = arith.constant dense<0.000000e+00> : vector<16xf32>
    %171 = vector.multi_reduction <add>, %170, %cst_86 [1] : vector<16x64xf32> to vector<16xf32>
    %172 = vector.shape_cast %171 : vector<16xf32> to vector<16x1xf32>
    %cst_87 = arith.constant 6.400000e+01 : f32
    %173 = vector.broadcast %cst_87 : f32 to vector<16x1xf32>
    %174 = arith.divf %172, %173 : vector<16x1xf32>
    %175 = vector.broadcast %174 : vector<16x1xf32> to vector<16x64xf32>
    %176 = arith.subf %170, %175 : vector<16x64xf32>
    %177 = arith.mulf %176, %176 : vector<16x64xf32>
    %cst_88 = arith.constant dense<0.000000e+00> : vector<16xf32>
    %178 = vector.multi_reduction <add>, %177, %cst_88 [1] : vector<16x64xf32> to vector<16xf32>
    %179 = vector.shape_cast %178 : vector<16xf32> to vector<16x1xf32>
    %cst_89 = arith.constant 6.400000e+01 : f32
    %180 = vector.broadcast %cst_89 : f32 to vector<16x1xf32>
    %181 = arith.divf %179, %180 : vector<16x1xf32>
    %182 = vector.broadcast %174 : vector<16x1xf32> to vector<16x64xf32>
    %183 = arith.subf %170, %182 : vector<16x64xf32>
    %cst_90 = arith.constant 9.99999996E-13 : f32
    %184 = vector.broadcast %cst_90 : f32 to vector<16x1xf32>
    %185 = arith.addf %181, %184 : vector<16x1xf32>
    %186 = math.rsqrt %185 : vector<16x1xf32>
    %187 = vector.broadcast %186 : vector<16x1xf32> to vector<16x64xf32>
    %188 = arith.mulf %183, %187 : vector<16x64xf32>
    %189 = vector.broadcast %33 : vector<1x64xf32> to vector<16x64xf32>
    %190 = arith.mulf %188, %189 : vector<16x64xf32>
    %191 = vector.broadcast %34 : vector<1x64xf32> to vector<16x64xf32>
    %192 = arith.addf %190, %191 : vector<16x64xf32>
    %c1_91 = arith.constant 1 : index
    %c0_92 = arith.constant 0 : index
    %c0_93 = arith.constant 0 : index
    %193 = vector.load %arg6[%c1_91, %c0_92, %c0_93] : memref<2x6x64xf32, #tpu.memory_space<vmem>>, vector<1x6x64xf32>
    %194 = vector.shape_cast %193 : vector<1x6x64xf32> to vector<6x64xf32>
    %195 = vector.extract_strided_slice %194 {offsets = [0, 0], sizes = [1, 64], strides = [1, 1]} : vector<6x64xf32> to vector<1x64xf32>
    %196 = vector.extract_strided_slice %194 {offsets = [1, 0], sizes = [1, 64], strides = [1, 1]} : vector<6x64xf32> to vector<1x64xf32>
    %197 = vector.extract_strided_slice %194 {offsets = [2, 0], sizes = [1, 64], strides = [1, 1]} : vector<6x64xf32> to vector<1x64xf32>
    %198 = vector.extract_strided_slice %194 {offsets = [3, 0], sizes = [1, 64], strides = [1, 1]} : vector<6x64xf32> to vector<1x64xf32>
    %199 = vector.extract_strided_slice %194 {offsets = [4, 0], sizes = [1, 64], strides = [1, 1]} : vector<6x64xf32> to vector<1x64xf32>
    %200 = vector.extract_strided_slice %194 {offsets = [5, 0], sizes = [1, 64], strides = [1, 1]} : vector<6x64xf32> to vector<1x64xf32>
    %c6 = arith.constant 6 : index
    %c0_94 = arith.constant 0 : index
    %c0_95 = arith.constant 0 : index
    %201 = vector.load %arg3[%c6, %c0_94, %c0_95] : memref<12x64x32xf32, #tpu.memory_space<vmem>>, vector<1x64x32xf32>
    %202 = vector.shape_cast %201 : vector<1x64x32xf32> to vector<64x32xf32>
    %cst_96 = arith.constant dense<0.000000e+00> : vector<16x32xf32>
    %203 = tpu.matmul %192, %202, %cst_96 {dimension_numbers = #tpu.dot_dimension_numbers<[1], [0], [0], [1], [0, 0, 1, 1], [], []>} : vector<16x64xf32>, vector<64x32xf32>, vector<16x32xf32> -> vector<16x32xf32>
    %c6_97 = arith.constant 6 : index
    %c0_98 = arith.constant 0 : index
    %c0_99 = arith.constant 0 : index
    %204 = vector.load %arg4[%c6_97, %c0_98, %c0_99] : memref<12x1x32xf32, #tpu.memory_space<vmem>>, vector<1x1x32xf32>
    %205 = vector.shape_cast %204 : vector<1x1x32xf32> to vector<1x32xf32>
    %206 = vector.broadcast %205 : vector<1x32xf32> to vector<16x32xf32>
    %207 = arith.addf %203, %206 : vector<16x32xf32>
    %c8 = arith.constant 8 : index
    %c0_100 = arith.constant 0 : index
    %c0_101 = arith.constant 0 : index
    %208 = vector.load %arg3[%c8, %c0_100, %c0_101] : memref<12x64x32xf32, #tpu.memory_space<vmem>>, vector<1x64x32xf32>
    %209 = vector.shape_cast %208 : vector<1x64x32xf32> to vector<64x32xf32>
    %cst_102 = arith.constant dense<0.000000e+00> : vector<16x32xf32>
    %210 = tpu.matmul %192, %209, %cst_102 {dimension_numbers = #tpu.dot_dimension_numbers<[1], [0], [0], [1], [0, 0, 1, 1], [], []>} : vector<16x64xf32>, vector<64x32xf32>, vector<16x32xf32> -> vector<16x32xf32>
    %c8_103 = arith.constant 8 : index
    %c0_104 = arith.constant 0 : index
    %c0_105 = arith.constant 0 : index
    %211 = vector.load %arg4[%c8_103, %c0_104, %c0_105] : memref<12x1x32xf32, #tpu.memory_space<vmem>>, vector<1x1x32xf32>
    %212 = vector.shape_cast %211 : vector<1x1x32xf32> to vector<1x32xf32>
    %213 = vector.broadcast %212 : vector<1x32xf32> to vector<16x32xf32>
    %214 = arith.addf %210, %213 : vector<16x32xf32>
    %c10 = arith.constant 10 : index
    %c0_106 = arith.constant 0 : index
    %c0_107 = arith.constant 0 : index
    %215 = vector.load %arg3[%c10, %c0_106, %c0_107] : memref<12x64x32xf32, #tpu.memory_space<vmem>>, vector<1x64x32xf32>
    %216 = vector.shape_cast %215 : vector<1x64x32xf32> to vector<64x32xf32>
    %cst_108 = arith.constant dense<0.000000e+00> : vector<16x32xf32>
    %217 = tpu.matmul %192, %216, %cst_108 {dimension_numbers = #tpu.dot_dimension_numbers<[1], [0], [0], [1], [0, 0, 1, 1], [], []>} : vector<16x64xf32>, vector<64x32xf32>, vector<16x32xf32> -> vector<16x32xf32>
    %c10_109 = arith.constant 10 : index
    %c0_110 = arith.constant 0 : index
    %c0_111 = arith.constant 0 : index
    %218 = vector.load %arg4[%c10_109, %c0_110, %c0_111] : memref<12x1x32xf32, #tpu.memory_space<vmem>>, vector<1x1x32xf32>
    %219 = vector.shape_cast %218 : vector<1x1x32xf32> to vector<1x32xf32>
    %220 = vector.broadcast %219 : vector<1x32xf32> to vector<16x32xf32>
    %221 = arith.addf %217, %220 : vector<16x32xf32>
    %222 = vector.shape_cast %207 : vector<16x32xf32> to vector<2x8x32xf32>
    %223 = vector.shape_cast %214 : vector<16x32xf32> to vector<2x8x32xf32>
    %224 = vector.shape_cast %221 : vector<16x32xf32> to vector<2x8x32xf32>
    "tpu.trace_start"() <{level = 10 : i32, message = "bqd,bkd->bqk"}> : () -> ()
    %cst_112 = arith.constant dense<0.000000e+00> : vector<2x8x8xf32>
    %225 = tpu.matmul %222, %223, %cst_112 {dimension_numbers = #tpu.dot_dimension_numbers<[2], [2], [1], [1], [0, 0, 0, 1, 1, 1], [0], [0]>} : vector<2x8x32xf32>, vector<2x8x32xf32>, vector<2x8x8xf32> -> vector<2x8x8xf32>
    "tpu.trace_stop"() : () -> ()
    %226 = vector.broadcast %26 : vector<2x1x8xf32> to vector<2x8x8xf32>
    %227 = arith.addf %225, %226 : vector<2x8x8xf32>
    %cst_113 = arith.constant dense<0xFF800000> : vector<2x8xf32>
    %228 = vector.multi_reduction <maximumf>, %227, %cst_113 [2] : vector<2x8x8xf32> to vector<2x8xf32>
    %229 = vector.shape_cast %228 : vector<2x8xf32> to vector<2x8x1xf32>
    %230 = vector.broadcast %229 : vector<2x8x1xf32> to vector<2x8x8xf32>
    %231 = arith.subf %227, %230 : vector<2x8x8xf32>
    %232 = math.exp %231 : vector<2x8x8xf32>
    %cst_114 = arith.constant dense<0.000000e+00> : vector<2x8xf32>
    %233 = vector.multi_reduction <add>, %232, %cst_114 [2] : vector<2x8x8xf32> to vector<2x8xf32>
    %234 = vector.shape_cast %233 : vector<2x8xf32> to vector<2x8x1xf32>
    %235 = tpu.reciprocal %234 {approx = true} : vector<2x8x1xf32> -> vector<2x8x1xf32>
    %236 = vector.broadcast %235 : vector<2x8x1xf32> to vector<2x8x8xf32>
    %237 = arith.mulf %232, %236 : vector<2x8x8xf32>
    "tpu.trace_start"() <{level = 10 : i32, message = "bqk,bkd->bqd"}> : () -> ()
    %cst_115 = arith.constant dense<0.000000e+00> : vector<2x8x32xf32>
    %238 = tpu.matmul %237, %224, %cst_115 {dimension_numbers = #tpu.dot_dimension_numbers<[2], [1], [1], [2], [0, 0, 0, 1, 1, 2], [0], [0]>} : vector<2x8x8xf32>, vector<2x8x32xf32>, vector<2x8x32xf32> -> vector<2x8x32xf32>
    "tpu.trace_stop"() : () -> ()
    %239 = vector.shape_cast %238 : vector<2x8x32xf32> to vector<16x32xf32>
    %c2_116 = arith.constant 2 : index
    %c0_117 = arith.constant 0 : index
    %c0_118 = arith.constant 0 : index
    %240 = vector.load %arg5[%c2_116, %c0_117, %c0_118] : memref<4x32x64xf32, #tpu.memory_space<vmem>>, vector<1x32x64xf32>
    %241 = vector.shape_cast %240 : vector<1x32x64xf32> to vector<32x64xf32>
    %cst_119 = arith.constant dense<0.000000e+00> : vector<16x64xf32>
    %242 = tpu.matmul %239, %241, %cst_119 {dimension_numbers = #tpu.dot_dimension_numbers<[1], [0], [0], [1], [0, 0, 1, 1], [], []>} : vector<16x32xf32>, vector<32x64xf32>, vector<16x64xf32> -> vector<16x64xf32>
    %243 = vector.broadcast %195 : vector<1x64xf32> to vector<16x64xf32>
    %244 = arith.addf %243, %242 : vector<16x64xf32>
    %c7 = arith.constant 7 : index
    %c0_120 = arith.constant 0 : index
    %c0_121 = arith.constant 0 : index
    %245 = vector.load %arg3[%c7, %c0_120, %c0_121] : memref<12x64x32xf32, #tpu.memory_space<vmem>>, vector<1x64x32xf32>
    %246 = vector.shape_cast %245 : vector<1x64x32xf32> to vector<64x32xf32>
    %cst_122 = arith.constant dense<0.000000e+00> : vector<16x32xf32>
    %247 = tpu.matmul %192, %246, %cst_122 {dimension_numbers = #tpu.dot_dimension_numbers<[1], [0], [0], [1], [0, 0, 1, 1], [], []>} : vector<16x64xf32>, vector<64x32xf32>, vector<16x32xf32> -> vector<16x32xf32>
    %c7_123 = arith.constant 7 : index
    %c0_124 = arith.constant 0 : index
    %c0_125 = arith.constant 0 : index
    %248 = vector.load %arg4[%c7_123, %c0_124, %c0_125] : memref<12x1x32xf32, #tpu.memory_space<vmem>>, vector<1x1x32xf32>
    %249 = vector.shape_cast %248 : vector<1x1x32xf32> to vector<1x32xf32>
    %250 = vector.broadcast %249 : vector<1x32xf32> to vector<16x32xf32>
    %251 = arith.addf %247, %250 : vector<16x32xf32>
    %c9 = arith.constant 9 : index
    %c0_126 = arith.constant 0 : index
    %c0_127 = arith.constant 0 : index
    %252 = vector.load %arg3[%c9, %c0_126, %c0_127] : memref<12x64x32xf32, #tpu.memory_space<vmem>>, vector<1x64x32xf32>
    %253 = vector.shape_cast %252 : vector<1x64x32xf32> to vector<64x32xf32>
    %cst_128 = arith.constant dense<0.000000e+00> : vector<16x32xf32>
    %254 = tpu.matmul %192, %253, %cst_128 {dimension_numbers = #tpu.dot_dimension_numbers<[1], [0], [0], [1], [0, 0, 1, 1], [], []>} : vector<16x64xf32>, vector<64x32xf32>, vector<16x32xf32> -> vector<16x32xf32>
    %c9_129 = arith.constant 9 : index
    %c0_130 = arith.constant 0 : index
    %c0_131 = arith.constant 0 : index
    %255 = vector.load %arg4[%c9_129, %c0_130, %c0_131] : memref<12x1x32xf32, #tpu.memory_space<vmem>>, vector<1x1x32xf32>
    %256 = vector.shape_cast %255 : vector<1x1x32xf32> to vector<1x32xf32>
    %257 = vector.broadcast %256 : vector<1x32xf32> to vector<16x32xf32>
    %258 = arith.addf %254, %257 : vector<16x32xf32>
    %c11 = arith.constant 11 : index
    %c0_132 = arith.constant 0 : index
    %c0_133 = arith.constant 0 : index
    %259 = vector.load %arg3[%c11, %c0_132, %c0_133] : memref<12x64x32xf32, #tpu.memory_space<vmem>>, vector<1x64x32xf32>
    %260 = vector.shape_cast %259 : vector<1x64x32xf32> to vector<64x32xf32>
    %cst_134 = arith.constant dense<0.000000e+00> : vector<16x32xf32>
    %261 = tpu.matmul %192, %260, %cst_134 {dimension_numbers = #tpu.dot_dimension_numbers<[1], [0], [0], [1], [0, 0, 1, 1], [], []>} : vector<16x64xf32>, vector<64x32xf32>, vector<16x32xf32> -> vector<16x32xf32>
    %c11_135 = arith.constant 11 : index
    %c0_136 = arith.constant 0 : index
    %c0_137 = arith.constant 0 : index
    %262 = vector.load %arg4[%c11_135, %c0_136, %c0_137] : memref<12x1x32xf32, #tpu.memory_space<vmem>>, vector<1x1x32xf32>
    %263 = vector.shape_cast %262 : vector<1x1x32xf32> to vector<1x32xf32>
    %264 = vector.broadcast %263 : vector<1x32xf32> to vector<16x32xf32>
    %265 = arith.addf %261, %264 : vector<16x32xf32>
    %266 = vector.shape_cast %251 : vector<16x32xf32> to vector<2x8x32xf32>
    %267 = vector.shape_cast %258 : vector<16x32xf32> to vector<2x8x32xf32>
    %268 = vector.shape_cast %265 : vector<16x32xf32> to vector<2x8x32xf32>
    "tpu.trace_start"() <{level = 10 : i32, message = "bqd,bkd->bqk"}> : () -> ()
    %cst_138 = arith.constant dense<0.000000e+00> : vector<2x8x8xf32>
    %269 = tpu.matmul %266, %267, %cst_138 {dimension_numbers = #tpu.dot_dimension_numbers<[2], [2], [1], [1], [0, 0, 0, 1, 1, 1], [0], [0]>} : vector<2x8x32xf32>, vector<2x8x32xf32>, vector<2x8x8xf32> -> vector<2x8x8xf32>
    "tpu.trace_stop"() : () -> ()
    %270 = vector.broadcast %26 : vector<2x1x8xf32> to vector<2x8x8xf32>
    %271 = arith.addf %269, %270 : vector<2x8x8xf32>
    %cst_139 = arith.constant dense<0xFF800000> : vector<2x8xf32>
    %272 = vector.multi_reduction <maximumf>, %271, %cst_139 [2] : vector<2x8x8xf32> to vector<2x8xf32>
    %273 = vector.shape_cast %272 : vector<2x8xf32> to vector<2x8x1xf32>
    %274 = vector.broadcast %273 : vector<2x8x1xf32> to vector<2x8x8xf32>
    %275 = arith.subf %271, %274 : vector<2x8x8xf32>
    %276 = math.exp %275 : vector<2x8x8xf32>
    %cst_140 = arith.constant dense<0.000000e+00> : vector<2x8xf32>
    %277 = vector.multi_reduction <add>, %276, %cst_140 [2] : vector<2x8x8xf32> to vector<2x8xf32>
    %278 = vector.shape_cast %277 : vector<2x8xf32> to vector<2x8x1xf32>
    %279 = tpu.reciprocal %278 {approx = true} : vector<2x8x1xf32> -> vector<2x8x1xf32>
    %280 = vector.broadcast %279 : vector<2x8x1xf32> to vector<2x8x8xf32>
    %281 = arith.mulf %276, %280 : vector<2x8x8xf32>
    "tpu.trace_start"() <{level = 10 : i32, message = "bqk,bkd->bqd"}> : () -> ()
    %cst_141 = arith.constant dense<0.000000e+00> : vector<2x8x32xf32>
    %282 = tpu.matmul %281, %268, %cst_141 {dimension_numbers = #tpu.dot_dimension_numbers<[2], [1], [1], [2], [0, 0, 0, 1, 1, 2], [0], [0]>} : vector<2x8x8xf32>, vector<2x8x32xf32>, vector<2x8x32xf32> -> vector<2x8x32xf32>
    "tpu.trace_stop"() : () -> ()
    %283 = vector.shape_cast %282 : vector<2x8x32xf32> to vector<16x32xf32>
    %c3_142 = arith.constant 3 : index
    %c0_143 = arith.constant 0 : index
    %c0_144 = arith.constant 0 : index
    %284 = vector.load %arg5[%c3_142, %c0_143, %c0_144] : memref<4x32x64xf32, #tpu.memory_space<vmem>>, vector<1x32x64xf32>
    %285 = vector.shape_cast %284 : vector<1x32x64xf32> to vector<32x64xf32>
    %cst_145 = arith.constant dense<0.000000e+00> : vector<16x64xf32>
    %286 = tpu.matmul %283, %285, %cst_145 {dimension_numbers = #tpu.dot_dimension_numbers<[1], [0], [0], [1], [0, 0, 1, 1], [], []>} : vector<16x32xf32>, vector<32x64xf32>, vector<16x64xf32> -> vector<16x64xf32>
    %287 = arith.addf %244, %286 : vector<16x64xf32>
    %288 = arith.addf %192, %287 : vector<16x64xf32>
    %cst_146 = arith.constant dense<0.000000e+00> : vector<16xf32>
    %289 = vector.multi_reduction <add>, %288, %cst_146 [1] : vector<16x64xf32> to vector<16xf32>
    %290 = vector.shape_cast %289 : vector<16xf32> to vector<16x1xf32>
    %cst_147 = arith.constant 6.400000e+01 : f32
    %291 = vector.broadcast %cst_147 : f32 to vector<16x1xf32>
    %292 = arith.divf %290, %291 : vector<16x1xf32>
    %293 = vector.broadcast %292 : vector<16x1xf32> to vector<16x64xf32>
    %294 = arith.subf %288, %293 : vector<16x64xf32>
    %295 = arith.mulf %294, %294 : vector<16x64xf32>
    %cst_148 = arith.constant dense<0.000000e+00> : vector<16xf32>
    %296 = vector.multi_reduction <add>, %295, %cst_148 [1] : vector<16x64xf32> to vector<16xf32>
    %297 = vector.shape_cast %296 : vector<16xf32> to vector<16x1xf32>
    %cst_149 = arith.constant 6.400000e+01 : f32
    %298 = vector.broadcast %cst_149 : f32 to vector<16x1xf32>
    %299 = arith.divf %297, %298 : vector<16x1xf32>
    %300 = vector.broadcast %292 : vector<16x1xf32> to vector<16x64xf32>
    %301 = arith.subf %288, %300 : vector<16x64xf32>
    %cst_150 = arith.constant 9.99999996E-13 : f32
    %302 = vector.broadcast %cst_150 : f32 to vector<16x1xf32>
    %303 = arith.addf %299, %302 : vector<16x1xf32>
    %304 = math.rsqrt %303 : vector<16x1xf32>
    %305 = vector.broadcast %304 : vector<16x1xf32> to vector<16x64xf32>
    %306 = arith.mulf %301, %305 : vector<16x64xf32>
    %307 = vector.broadcast %196 : vector<1x64xf32> to vector<16x64xf32>
    %308 = arith.mulf %306, %307 : vector<16x64xf32>
    %309 = vector.broadcast %197 : vector<1x64xf32> to vector<16x64xf32>
    %310 = arith.addf %308, %309 : vector<16x64xf32>
    %c1_151 = arith.constant 1 : index
    %c0_152 = arith.constant 0 : index
    %c0_153 = arith.constant 0 : index
    %311 = vector.load %arg7[%c1_151, %c0_152, %c0_153] : memref<2x64x128xf32, #tpu.memory_space<vmem>>, vector<1x64x128xf32>
    %312 = vector.shape_cast %311 : vector<1x64x128xf32> to vector<64x128xf32>
    %cst_154 = arith.constant dense<0.000000e+00> : vector<16x128xf32>
    %313 = tpu.matmul %310, %312, %cst_154 {dimension_numbers = #tpu.dot_dimension_numbers<[1], [0], [0], [1], [0, 0, 1, 1], [], []>} : vector<16x64xf32>, vector<64x128xf32>, vector<16x128xf32> -> vector<16x128xf32>
    %c1_155 = arith.constant 1 : index
    %c0_156 = arith.constant 0 : index
    %c0_157 = arith.constant 0 : index
    %314 = vector.load %arg8[%c1_155, %c0_156, %c0_157] : memref<2x1x128xf32, #tpu.memory_space<vmem>>, vector<1x1x128xf32>
    %315 = vector.shape_cast %314 : vector<1x1x128xf32> to vector<1x128xf32>
    %316 = vector.broadcast %315 : vector<1x128xf32> to vector<16x128xf32>
    %317 = arith.addf %313, %316 : vector<16x128xf32>
    %cst_158 = arith.constant 5.000000e-01 : f32
    %318 = vector.broadcast %cst_158 : f32 to vector<16x128xf32>
    %319 = arith.mulf %318, %317 : vector<16x128xf32>
    %cst_159 = arith.constant 4.471500e-02 : f32
    %320 = vector.broadcast %cst_159 : f32 to vector<16x128xf32>
    %321 = arith.mulf %320, %317 : vector<16x128xf32>
    %322 = arith.mulf %321, %317 : vector<16x128xf32>
    %323 = arith.mulf %322, %317 : vector<16x128xf32>
    %324 = arith.addf %317, %323 : vector<16x128xf32>
    %cst_160 = arith.constant 0.797884583 : f32
    %325 = vector.broadcast %cst_160 : f32 to vector<16x128xf32>
    %326 = arith.mulf %325, %324 : vector<16x128xf32>
    %327 = math.tanh %326 : vector<16x128xf32>
    %cst_161 = arith.constant 1.000000e+00 : f32
    %328 = vector.broadcast %cst_161 : f32 to vector<16x128xf32>
    %329 = arith.addf %328, %327 : vector<16x128xf32>
    %330 = arith.mulf %319, %329 : vector<16x128xf32>
    %c1_162 = arith.constant 1 : index
    %c0_163 = arith.constant 0 : index
    %c0_164 = arith.constant 0 : index
    %331 = vector.load %arg9[%c1_162, %c0_163, %c0_164] : memref<2x128x64xf32, #tpu.memory_space<vmem>>, vector<1x128x64xf32>
    %332 = vector.shape_cast %331 : vector<1x128x64xf32> to vector<128x64xf32>
    %cst_165 = arith.constant dense<0.000000e+00> : vector<16x64xf32>
    %333 = tpu.matmul %330, %332, %cst_165 {dimension_numbers = #tpu.dot_dimension_numbers<[1], [0], [0], [1], [0, 0, 1, 1], [], []>} : vector<16x128xf32>, vector<128x64xf32>, vector<16x64xf32> -> vector<16x64xf32>
    %334 = vector.broadcast %198 : vector<1x64xf32> to vector<16x64xf32>
    %335 = arith.addf %333, %334 : vector<16x64xf32>
    %336 = arith.addf %310, %335 : vector<16x64xf32>
    %cst_166 = arith.constant dense<0.000000e+00> : vector<16xf32>
    %337 = vector.multi_reduction <add>, %336, %cst_166 [1] : vector<16x64xf32> to vector<16xf32>
    %338 = vector.shape_cast %337 : vector<16xf32> to vector<16x1xf32>
    %cst_167 = arith.constant 6.400000e+01 : f32
    %339 = vector.broadcast %cst_167 : f32 to vector<16x1xf32>
    %340 = arith.divf %338, %339 : vector<16x1xf32>
    %341 = vector.broadcast %340 : vector<16x1xf32> to vector<16x64xf32>
    %342 = arith.subf %336, %341 : vector<16x64xf32>
    %343 = arith.mulf %342, %342 : vector<16x64xf32>
    %cst_168 = arith.constant dense<0.000000e+00> : vector<16xf32>
    %344 = vector.multi_reduction <add>, %343, %cst_168 [1] : vector<16x64xf32> to vector<16xf32>
    %345 = vector.shape_cast %344 : vector<16xf32> to vector<16x1xf32>
    %cst_169 = arith.constant 6.400000e+01 : f32
    %346 = vector.broadcast %cst_169 : f32 to vector<16x1xf32>
    %347 = arith.divf %345, %346 : vector<16x1xf32>
    %348 = vector.broadcast %340 : vector<16x1xf32> to vector<16x64xf32>
    %349 = arith.subf %336, %348 : vector<16x64xf32>
    %cst_170 = arith.constant 9.99999996E-13 : f32
    %350 = vector.broadcast %cst_170 : f32 to vector<16x1xf32>
    %351 = arith.addf %347, %350 : vector<16x1xf32>
    %352 = math.rsqrt %351 : vector<16x1xf32>
    %353 = vector.broadcast %352 : vector<16x1xf32> to vector<16x64xf32>
    %354 = arith.mulf %349, %353 : vector<16x64xf32>
    %355 = vector.broadcast %199 : vector<1x64xf32> to vector<16x64xf32>
    %356 = arith.mulf %354, %355 : vector<16x64xf32>
    %357 = vector.broadcast %200 : vector<1x64xf32> to vector<16x64xf32>
    %358 = arith.addf %356, %357 : vector<16x64xf32>
    %359 = vector.extract_strided_slice %358 {offsets = [0, 0], sizes = [1, 64], strides = [1, 1]} : vector<16x64xf32> to vector<1x64xf32>
    %360 = vector.extract_strided_slice %358 {offsets = [8, 0], sizes = [1, 64], strides = [1, 1]} : vector<16x64xf32> to vector<1x64xf32>
    %361 = tpu.concatenate %359, %360 in 0 : vector<1x64xf32>, vector<1x64xf32> -> vector<2x64xf32>
    %c0_171 = arith.constant 0 : index
    %c0_172 = arith.constant 0 : index
    %362 = vector.load %arg10[%c0_171, %c0_172] : memref<64x2xf32, #tpu.memory_space<vmem>>, vector<64x2xf32>
    %cst_173 = arith.constant dense<0.000000e+00> : vector<2x2xf32>
    %363 = tpu.matmul %361, %362, %cst_173 {dimension_numbers = #tpu.dot_dimension_numbers<[1], [0], [0], [1], [0, 0, 1, 1], [], []>} : vector<2x64xf32>, vector<64x2xf32>, vector<2x2xf32> -> vector<2x2xf32>
    %c0_174 = arith.constant 0 : index
    %c0_175 = arith.constant 0 : index
    %364 = vector.load %arg11[%c0_174, %c0_175] : memref<1x2xf32, #tpu.memory_space<vmem>>, vector<1x2xf32>
    %365 = vector.broadcast %364 : vector<1x2xf32> to vector<2x2xf32>
    %366 = arith.addf %363, %365 : vector<2x2xf32>
    %c0_176 = arith.constant 0 : index
    %c0_177 = arith.constant 0 : index
    %367 = vector.load %arg12[%c0_176, %c0_177] : memref<2x2xf32, #tpu.memory_space<vmem>>, vector<2x2xf32>
    tpu.vector_store %arg12[%c0_176, %c0_177], %366 {strides = array<i32>} : memref<2x2xf32, #tpu.memory_space<vmem>>, vector<2x2xf32>,
    return
  }
}

</mosaic_0001>

<llo_original>
// kernel: bert_classifier_forward.1
$region0: #{bert_classifier_forward.1}
  #allocation0 [shape = 'u32[]', space=smem, size = 0x4, offset = 0x4, fixed_abs, tag = 'smem constant byte address 0x4 - core index']
  #allocation1 [shape = 'u32[72,128]{1,0:T(1,128)}', space=vmem, size = 0x9000, scoped, tag = 'internal scratch']
  %s0 = inlined_call_operand.vmem [shape: f32[16,64], index: 0, kind: input, shape index: {}]
  %s1 = inlined_call_operand.vmem [shape: f32[2,1,8], index: 1, kind: input, shape index: {}]
  %s2 = inlined_call_operand.vmem [shape: f32[2,64], index: 2, kind: input, shape index: {}]
  %s3 = inlined_call_operand.vmem [shape: f32[12,64,32], index: 3, kind: input, shape index: {}]
  %s4 = inlined_call_operand.vmem [shape: f32[12,1,32], index: 4, kind: input, shape index: {}]
  %s5 = inlined_call_operand.vmem [shape: f32[4,32,64], index: 5, kind: input, shape index: {}]
  %s6 = inlined_call_operand.vmem [shape: f32[2,6,64], index: 6, kind: input, shape index: {}]
  %s7 = inlined_call_operand.vmem [shape: f32[2,64,128], index: 7, kind: input, shape index: {}]
  %s8 = inlined_call_operand.vmem [shape: f32[2,1,128], index: 8, kind: input, shape index: {}]
  %s9 = inlined_call_operand.vmem [shape: f32[2,128,64], index: 9, kind: input, shape index: {}]
  %s10 = inlined_call_operand.vmem [shape: f32[64,2], index: 10, kind: input, shape index: {}]
  %s11 = inlined_call_operand.vmem [shape: f32[1,2], index: 11, kind: input, shape index: {}]
  %s12 = inlined_call_operand.hbm [shape: f32[2,2], index: 12, kind: output, shape index: {}]
  %s13 = sld [smem:[#allocation0]]
  $region58: #{bert_classifier_forward.1} parent=0
    _
  %s15 = ssub.s32 1, %s13
  %s16 = scalar_select 0, %s15, %s13
  $region1: #{bert_classifier_forward.1} parent=0
    #allocation2 [shape = 'u8[1024]{0}', space=vmem, size = 0x400, scoped, tag = 'output window, operand 0, single buffered']
    #allocation3 [shape = 's32[1]{0}', space=sflag, size = 0x4, scoped, tag = 'scoped memory for bert_classifier_forward.1']
    %17 = vsyncpa [#allocation3], 0
    // Predicated region
    $region2: #{bert_classifier_forward.1} parent=1 // pred_check
      _
    $region3: #{bert_classifier_forward.1} parent=1 // pred_check_branch
      %19 = sbr.rel (0) target = $region5
    $region4: #{bert_classifier_forward.1} parent=1 // pred_region
      _
    $region5: #{bert_classifier_forward.1} parent=1 // pred_fallthru
      _
    // Predicated region
    $region6: #{bert_classifier_forward.1} parent=1 // pred_check
      _
    $region7: #{bert_classifier_forward.1} parent=1 // pred_check_branch
      %21 = sbr.rel (0) target = $region9
    $region8: #{bert_classifier_forward.1} parent=1 // pred_region
      _
    $region9: #{bert_classifier_forward.1} parent=1 // pred_fallthru
      _
    // Predicated region
    $region10: #{bert_classifier_forward.1} parent=1 // pred_check
      _
    $region11: #{bert_classifier_forward.1} parent=1 // pred_check_branch
      %23 = sbr.rel (0) target = $region13
    $region12: #{bert_classifier_forward.1} parent=1 // pred_region
      _
    $region13: #{bert_classifier_forward.1} parent=1 // pred_fallthru
      _
    // Predicated region
    $region14: #{bert_classifier_forward.1} parent=1 // pred_check
      _
    $region15: #{bert_classifier_forward.1} parent=1 // pred_check_branch
      %25 = sbr.rel (0) target = $region17
    $region16: #{bert_classifier_forward.1} parent=1 // pred_region
      _
    $region17: #{bert_classifier_forward.1} parent=1 // pred_fallthru
      _
    // Predicated region
    $region18: #{bert_classifier_forward.1} parent=1 // pred_check
      _
    $region19: #{bert_classifier_forward.1} parent=1 // pred_check_branch
      %27 = sbr.rel (0) target = $region21
    $region20: #{bert_classifier_forward.1} parent=1 // pred_region
      _
    $region21: #{bert_classifier_forward.1} parent=1 // pred_fallthru
      _
    // Predicated region
    $region22: #{bert_classifier_forward.1} parent=1 // pred_check
      _
    $region23: #{bert_classifier_forward.1} parent=1 // pred_check_branch
      %29 = sbr.rel (0) target = $region25
    $region24: #{bert_classifier_forward.1} parent=1 // pred_region
      _
    $region25: #{bert_classifier_forward.1} parent=1 // pred_fallthru
      _
    // Predicated region
    $region26: #{bert_classifier_forward.1} parent=1 // pred_check
      _
    $region27: #{bert_classifier_forward.1} parent=1 // pred_check_branch
      %31 = sbr.rel (0) target = $region29
    $region28: #{bert_classifier_forward.1} parent=1 // pred_region
      _
    $region29: #{bert_classifier_forward.1} parent=1 // pred_fallthru
      _
    // Predicated region
    $region30: #{bert_classifier_forward.1} parent=1 // pred_check
      _
    $region31: #{bert_classifier_forward.1} parent=1 // pred_check_branch
      %33 = sbr.rel (0) target = $region33
    $region32: #{bert_classifier_forward.1} parent=1 // pred_region
      _
    $region33: #{bert_classifier_forward.1} parent=1 // pred_fallthru
      _
    // Predicated region
    $region34: #{bert_classifier_forward.1} parent=1 // pred_check
      _
    $region35: #{bert_classifier_forward.1} parent=1 // pred_check_branch
      %35 = sbr.rel (0) target = $region37
    $region36: #{bert_classifier_forward.1} parent=1 // pred_region
      _
    $region37: #{bert_classifier_forward.1} parent=1 // pred_fallthru
      _
    // Predicated region
    $region38: #{bert_classifier_forward.1} parent=1 // pred_check
      _
    $region39: #{bert_classifier_forward.1} parent=1 // pred_check_branch
      %37 = sbr.rel (0) target = $region41
    $region40: #{bert_classifier_forward.1} parent=1 // pred_region
      _
    $region41: #{bert_classifier_forward.1} parent=1 // pred_fallthru
      _
    // Predicated region
    $region42: #{bert_classifier_forward.1} parent=1 // pred_check
      _
    $region43: #{bert_classifier_forward.1} parent=1 // pred_check_branch
      %39 = sbr.rel (0) target = $region45
    $region44: #{bert_classifier_forward.1} parent=1 // pred_region
      _
    $region45: #{bert_classifier_forward.1} parent=1 // pred_fallthru
      _
    // Predicated region
    $region46: #{bert_classifier_forward.1} parent=1 // pred_check
      _
    $region47: #{bert_classifier_forward.1} parent=1 // pred_check_branch
      %41 = sbr.rel (0) target = $region49
    $region48: #{bert_classifier_forward.1} parent=1 // pred_region
      _
    $region49: #{bert_classifier_forward.1} parent=1 // pred_fallthru
      _
    %v42 = vld [vmem:[%s2] sm:$0x3]
    %v43 = vld [vmem:[%s0] sm:$0xff]
    %v44 = vld [vmem:[%s0 + $0x8] sm:$0xff]
    %vm45 = vcmask 523264
    %v46 = vsel %vm45, %v43, 0.0
    %47 = vadd.xlane.f32.xlu0 %v46
    %v48 = vpop.xlane.xlu0 %47
    %v49 = vsel %vm45, %v44, 0.0
    %50 = vadd.xlane.f32.xlu0 %v49
    %v51 = vpop.xlane.xlu0 %50
    %v52 = vrcp.pop 64.0
    %v53 = vmul.f32 64.0, %v52
    %v54 = vsub.f32 1.0, %v53
    %v55 = vmul.f32 %v52, %v54
    %v56 = vadd.f32 %v52, %v55
    %vm57 = vweird.f32 %v52
    %v58 = vsel %vm57, %v52, %v56
    %v59 = vmul.f32 %v48, %v58
    %v60 = vmul.f32 %v51, %v58
    %v61 = vsub.f32 %v43, %v59
    %v62 = vsub.f32 %v44, %v60
    %v63 = vmul.f32 %v61, %v61
    %v64 = vmul.f32 %v62, %v62
    %v65 = vsel %vm45, %v63, 0.0
    %66 = vadd.xlane.f32.xlu0 %v65
    %v67 = vpop.xlane.xlu0 %66
    %v68 = vsel %vm45, %v64, 0.0
    %69 = vadd.xlane.f32.xlu0 %v68
    %v70 = vpop.xlane.xlu0 %69
    %v71 = vmul.f32 %v67, %v58
    %v72 = vmul.f32 %v70, %v58
    %v73 = vadd.f32 %v71, 1e-12
    %v74 = vadd.f32 %v72, 1e-12
    %v75 = vrsqrt.pop %v73
    %v76 = vmul.f32 %v75, %v73
    %v77 = vmul.f32 %v76, %v75
    %v78 = vmul.f32 0.5, %v77
    %v79 = vsub.f32 1.5, %v78
    %v80 = vmul.f32 %v75, %v79
    %vm81 = vweird.f32 %v73
    %vm82 = vweird.f32 %v75
    %vm83 = vmor %vm81, %vm82
    %v84 = vsel %vm83, %v75, %v80
    %v85 = vrsqrt.pop %v74
    %v86 = vmul.f32 %v85, %v74
    %v87 = vmul.f32 %v86, %v85
    %v88 = vmul.f32 0.5, %v87
    %v89 = vsub.f32 1.5, %v88
    %v90 = vmul.f32 %v85, %v89
    %vm91 = vweird.f32 %v74
    %vm92 = vweird.f32 %v85
    %vm93 = vmor %vm91, %vm92
    %v94 = vsel %vm93, %v85, %v90
    %v95 = vmul.f32 %v61, %v84
    %v96 = vmul.f32 %v62, %v94
    %v97 = vperm.slane %v42, 0
    %v98 = vmul.f32 %v95, %v97
    %v99 = vmul.f32 %v96, %v97
    %v100 = vperm.slane %v42, 1
    %v101 = vadd.f32 %v98, %v100
    %v102 = vadd.f32 %v99, %v100
    %v103 = vld [vmem:[%s1] sm:$0x1]
    %v104 = vld [vmem:[%s1 + $0x1] sm:$0x1]
    %v105 = vld [vmem:[%s6] sm:$0x3f]
    %v106 = vld [vmem:[%s3] sm:$0xff]
    %v107 = vld [vmem:[%s3 + $0x8] sm:$0xff]
    %v108 = vld [vmem:[%s3 + $0x10] sm:$0xff]
    %v109 = vld [vmem:[%s3 + $0x18] sm:$0xff]
    %v110 = vld [vmem:[%s3 + $0x20] sm:$0xff]
    %v111 = vld [vmem:[%s3 + $0x28] sm:$0xff]
    %v112 = vld [vmem:[%s3 + $0x30] sm:$0xff]
    %v113 = vld [vmem:[%s3 + $0x38] sm:$0xff]
    %v114 = vld [vmem:[%s4] sm:$0x1]
    %v116 = vperm.slane %v114, 0
    %v119 = vsel %vm45, %v101, 0
    %v122 = vsel %vm45, %v102, 0
    %124 = vmatpush.msra.mxu0 0.0
    %125 = vmatpush.msra.mxu0 0.0
    %126 = vmatpush.msra.mxu0 0.0
    %127 = vmatpush.msra.mxu0 0.0
    %128 = vmatpush.msra.mxu0 0.0
    %129 = vmatpush.msra.mxu0 0.0
    %130 = vmatpush.msra.mxu0 0.0
    %131 = vmatpush.msra.mxu0 0.0
    %132 = vmatpush.msra.mxu0 %v113
    %133 = vmatpush.msra.mxu0 %v112
    %134 = vmatpush.msra.mxu0 %v111
    %135 = vmatpush.msra.mxu0 %v110
    %136 = vmatpush.msra.mxu0 %v109
    %137 = vmatpush.msra.mxu0 %v108
    %138 = vmatpush.msra.mxu0 %v107
    %139 = vmatpush.msra.mxu0 %v106
    %140 = vmatmul.f32.gmra.mxu0 %v119
    %v141 = vpop.f32.mrf.mxu0
    %v142 = vadd.f32 %v116, %v141
    %143 = vmatmul.f32.gmra.mxu0 %v122
    %v144 = vpop.f32.mrf.mxu0
    %v145 = vadd.f32 %v116, %v144
    %146 = vdwg.mxu0
    %s147 = scalar_lea.vmem %s3, 128
    %v148 = vld [vmem:[%s147] sm:$0xff]
    %v149 = vld [vmem:[%s147 + $0x8] sm:$0xff]
    %v150 = vld [vmem:[%s147 + $0x10] sm:$0xff]
    %v151 = vld [vmem:[%s147 + $0x18] sm:$0xff]
    %v152 = vld [vmem:[%s147 + $0x20] sm:$0xff]
    %v153 = vld [vmem:[%s147 + $0x28] sm:$0xff]
    %v154 = vld [vmem:[%s147 + $0x30] sm:$0xff]
    %v155 = vld [vmem:[%s147 + $0x38] sm:$0xff]
    %s156 = scalar_lea.vmem %s4, 2
    %v157 = vld [vmem:[%s156] sm:$0x1]
    %v159 = vperm.slane %v157, 0
    %161 = vmatpush.msra.mxu0 0.0
    %162 = vmatpush.msra.mxu0 0.0
    %163 = vmatpush.msra.mxu0 0.0
    %164 = vmatpush.msra.mxu0 0.0
    %165 = vmatpush.msra.mxu0 0.0
    %166 = vmatpush.msra.mxu0 0.0
    %167 = vmatpush.msra.mxu0 0.0
    %168 = vmatpush.msra.mxu0 0.0
    %169 = vmatpush.msra.mxu0 %v155
    %170 = vmatpush.msra.mxu0 %v154
    %171 = vmatpush.msra.mxu0 %v153
    %172 = vmatpush.msra.mxu0 %v152
    %173 = vmatpush.msra.mxu0 %v151
    %174 = vmatpush.msra.mxu0 %v150
    %175 = vmatpush.msra.mxu0 %v149
    %176 = vmatpush.msra.mxu0 %v148
    %177 = vmatmul.f32.gmra.mxu0 %v119
    %v178 = vpop.f32.mrf.mxu0
    %v179 = vadd.f32 %v159, %v178
    %180 = vmatmul.f32.gmra.mxu0 %v122
    %v181 = vpop.f32.mrf.mxu0
    %v182 = vadd.f32 %v159, %v181
    %183 = vdwg.mxu0
    %s184 = scalar_lea.vmem %s3, 256
    %v185 = vld [vmem:[%s184] sm:$0xff]
    %v186 = vld [vmem:[%s184 + $0x8] sm:$0xff]
    %v187 = vld [vmem:[%s184 + $0x10] sm:$0xff]
    %v188 = vld [vmem:[%s184 + $0x18] sm:$0xff]
    %v189 = vld [vmem:[%s184 + $0x20] sm:$0xff]
    %v190 = vld [vmem:[%s184 + $0x28] sm:$0xff]
    %v191 = vld [vmem:[%s184 + $0x30] sm:$0xff]
    %v192 = vld [vmem:[%s184 + $0x38] sm:$0xff]
    %s193 = scalar_lea.vmem %s4, 4
    %v194 = vld [vmem:[%s193] sm:$0x1]
    %v196 = vperm.slane %v194, 0
    %198 = vmatpush.msra.mxu0 0.0
    %199 = vmatpush.msra.mxu0 0.0
    %200 = vmatpush.msra.mxu0 0.0
    %201 = vmatpush.msra.mxu0 0.0
    %202 = vmatpush.msra.mxu0 0.0
    %203 = vmatpush.msra.mxu0 0.0
    %204 = vmatpush.msra.mxu0 0.0
    %205 = vmatpush.msra.mxu0 0.0
    %206 = vmatpush.msra.mxu0 %v192
    %207 = vmatpush.msra.mxu0 %v191
    %208 = vmatpush.msra.mxu0 %v190
    %209 = vmatpush.msra.mxu0 %v189
    %210 = vmatpush.msra.mxu0 %v188
    %211 = vmatpush.msra.mxu0 %v187
    %212 = vmatpush.msra.mxu0 %v186
    %213 = vmatpush.msra.mxu0 %v185
    %214 = vmatmul.f32.gmra.mxu0 %v119
    %v215 = vpop.f32.mrf.mxu0
    %v216 = vadd.f32 %v196, %v215
    %217 = vmatmul.f32.gmra.mxu0 %v122
    %v218 = vpop.f32.mrf.mxu0
    %v219 = vadd.f32 %v196, %v218
    %220 = vdwg.mxu0
    %v223 = vperm.slane %v103, 0
    %v224 = vperm.slane %v104, 0
    %vm227 = vcmask 261120
    %v229 = vsel %vm227, %v142, 0
    %v232 = vsel %vm227, %v179, 0
    %234 = vmatpush.xpose.msra.mxu0 0.0
    %235 = vmatpush.xpose.msra.mxu0 0.0
    %236 = vmatpush.xpose.msra.mxu0 0.0
    %237 = vmatpush.xpose.msra.mxu0 0.0
    %238 = vmatpush.xpose.msra.mxu0 0.0
    %239 = vmatpush.xpose.msra.mxu0 0.0
    %240 = vmatpush.xpose.msra.mxu0 0.0
    %241 = vmatpush.xpose.msra.mxu0 0.0
    %242 = vmatpush.xpose.msra.mxu0 0.0
    %243 = vmatpush.xpose.msra.mxu0 0.0
    %244 = vmatpush.xpose.msra.mxu0 0.0
    %245 = vmatpush.xpose.msra.mxu0 0.0
    %246 = vmatpush.xpose.msra.mxu0 0.0
    %247 = vmatpush.xpose.msra.mxu0 0.0
    %248 = vmatpush.xpose.msra.mxu0 0.0
    %249 = vmatpush.xpose.msra.mxu0 %v232
    %250 = vmatmul.f32.gmra.mxu0 %v229
    %v251 = vpop.f32.mrf.mxu0
    %v252 = vadd.f32 %v223, %v251
    %253 = vdwg.mxu0
    %v255 = vsel %vm227, %v145, 0
    %v258 = vsel %vm227, %v182, 0
    %260 = vmatpush.xpose.msra.mxu0 0.0
    %261 = vmatpush.xpose.msra.mxu0 0.0
    %262 = vmatpush.xpose.msra.mxu0 0.0
    %263 = vmatpush.xpose.msra.mxu0 0.0
    %264 = vmatpush.xpose.msra.mxu0 0.0
    %265 = vmatpush.xpose.msra.mxu0 0.0
    %266 = vmatpush.xpose.msra.mxu0 0.0
    %267 = vmatpush.xpose.msra.mxu0 0.0
    %268 = vmatpush.xpose.msra.mxu0 0.0
    %269 = vmatpush.xpose.msra.mxu0 0.0
    %270 = vmatpush.xpose.msra.mxu0 0.0
    %271 = vmatpush.xpose.msra.mxu0 0.0
    %272 = vmatpush.xpose.msra.mxu0 0.0
    %273 = vmatpush.xpose.msra.mxu0 0.0
    %274 = vmatpush.xpose.msra.mxu0 0.0
    %275 = vmatpush.xpose.msra.mxu0 %v258
    %276 = vmatmul.f32.gmra.mxu0 %v255
    %v277 = vpop.f32.mrf.mxu0
    %v278 = vadd.f32 %v224, %v277
    %279 = vdwg.mxu0
    %vm280 = vcmask 64512
    %v281 = vsel %vm280, %v252, -inf
    %282 = vmax.xlane.f32.xlu0 %v281
    %v283 = vpop.xlane.xlu0 %282
    %v284 = vsel %vm280, %v278, -inf
    %285 = vmax.xlane.f32.xlu0 %v284
    %v286 = vpop.xlane.xlu0 %285
    %v287 = vsub.f32 %v252, %v283
    %v288 = vsub.f32 %v278, %v286
    %v289 = vmul.f32 %v287, 1.442695
    %v290 = vpow.pop %v289
    %v291 = vmul.f32 %v288, 1.442695
    %v292 = vpow.pop %v291
    %v293 = vsel %vm280, %v290, 0.0
    %294 = vadd.xlane.f32.xlu0 %v293
    %v295 = vpop.xlane.xlu0 %294
    %v296 = vsel %vm280, %v292, 0.0
    %297 = vadd.xlane.f32.xlu0 %v296
    %v298 = vpop.xlane.xlu0 %297
    %v299 = vrcp.pop %v295
    %v300 = vrcp.pop %v298
    %v301 = vmul.f32 %v290, %v299
    %v302 = vmul.f32 %v292, %v300
    %v304 = vsel %vm280, %v301, 0
    %306 = vmatpush.msra.mxu0 0.0
    %307 = vmatpush.msra.mxu0 0.0
    %308 = vmatpush.msra.mxu0 0.0
    %309 = vmatpush.msra.mxu0 0.0
    %310 = vmatpush.msra.mxu0 0.0
    %311 = vmatpush.msra.mxu0 0.0
    %312 = vmatpush.msra.mxu0 0.0
    %313 = vmatpush.msra.mxu0 0.0
    %314 = vmatpush.msra.mxu0 0.0
    %315 = vmatpush.msra.mxu0 0.0
    %316 = vmatpush.msra.mxu0 0.0
    %317 = vmatpush.msra.mxu0 0.0
    %318 = vmatpush.msra.mxu0 0.0
    %319 = vmatpush.msra.mxu0 0.0
    %320 = vmatpush.msra.mxu0 0.0
    %321 = vmatpush.msra.mxu0 %v216
    %322 = vmatmul.f32.gmra.mxu0 %v304
    %v323 = vpop.f32.mrf.mxu0
    %v324 = vadd.f32 0.0, %v323
    %325 = vdwg.mxu0
    %v327 = vsel %vm280, %v302, 0
    %329 = vmatpush.msra.mxu0 0.0
    %330 = vmatpush.msra.mxu0 0.0
    %331 = vmatpush.msra.mxu0 0.0
    %332 = vmatpush.msra.mxu0 0.0
    %333 = vmatpush.msra.mxu0 0.0
    %334 = vmatpush.msra.mxu0 0.0
    %335 = vmatpush.msra.mxu0 0.0
    %336 = vmatpush.msra.mxu0 0.0
    %337 = vmatpush.msra.mxu0 0.0
    %338 = vmatpush.msra.mxu0 0.0
    %339 = vmatpush.msra.mxu0 0.0
    %340 = vmatpush.msra.mxu0 0.0
    %341 = vmatpush.msra.mxu0 0.0
    %342 = vmatpush.msra.mxu0 0.0
    %343 = vmatpush.msra.mxu0 0.0
    %344 = vmatpush.msra.mxu0 %v219
    %345 = vmatmul.f32.gmra.mxu0 %v327
    %v346 = vpop.f32.mrf.mxu0
    %v347 = vadd.f32 0.0, %v346
    %348 = vdwg.mxu0
    %v349 = vld [vmem:[%s5] sm:$0xff]
    %v350 = vld [vmem:[%s5 + $0x8] sm:$0xff]
    %v351 = vld [vmem:[%s5 + $0x10] sm:$0xff]
    %v352 = vld [vmem:[%s5 + $0x18] sm:$0xff]
    %v354 = vsel %vm227, %v324, 0
    %v357 = vsel %vm227, %v347, 0
    %359 = vmatpush.msra.mxu0 0.0
    %360 = vmatpush.msra.mxu0 0.0
    %361 = vmatpush.msra.mxu0 0.0
    %362 = vmatpush.msra.mxu0 0.0
    %363 = vmatpush.msra.mxu0 0.0
    %364 = vmatpush.msra.mxu0 0.0
    %365 = vmatpush.msra.mxu0 0.0
    %366 = vmatpush.msra.mxu0 0.0
    %367 = vmatpush.msra.mxu0 0.0
    %368 = vmatpush.msra.mxu0 0.0
    %369 = vmatpush.msra.mxu0 0.0
    %370 = vmatpush.msra.mxu0 0.0
    %371 = vmatpush.msra.mxu0 %v352
    %372 = vmatpush.msra.mxu0 %v351
    %373 = vmatpush.msra.mxu0 %v350
    %374 = vmatpush.msra.mxu0 %v349
    %375 = vmatmul.f32.gmra.mxu0 %v354
    %v376 = vpop.f32.mrf.mxu0
    %v377 = vadd.f32 0.0, %v376
    %378 = vmatmul.f32.gmra.mxu0 %v357
    %v379 = vpop.f32.mrf.mxu0
    %v380 = vadd.f32 0.0, %v379
    %381 = vdwg.mxu0
    %v382 = vperm.slane %v105, 0
    %v383 = vadd.f32 %v382, %v377
    %v384 = vadd.f32 %v382, %v380
    %s385 = scalar_lea.vmem %s3, 64
    %v386 = vld [vmem:[%s385] sm:$0xff]
    %v387 = vld [vmem:[%s385 + $0x8] sm:$0xff]
    %v388 = vld [vmem:[%s385 + $0x10] sm:$0xff]
    %v389 = vld [vmem:[%s385 + $0x18] sm:$0xff]
    %v390 = vld [vmem:[%s385 + $0x20] sm:$0xff]
    %v391 = vld [vmem:[%s385 + $0x28] sm:$0xff]
    %v392 = vld [vmem:[%s385 + $0x30] sm:$0xff]
    %v393 = vld [vmem:[%s385 + $0x38] sm:$0xff]
    %s394 = scalar_lea.vmem %s4, 1
    %v395 = vld [vmem:[%s394] sm:$0x1]
    %v397 = vperm.slane %v395, 0
    %399 = vmatpush.msra.mxu0 0.0
    %400 = vmatpush.msra.mxu0 0.0
    %401 = vmatpush.msra.mxu0 0.0
    %402 = vmatpush.msra.mxu0 0.0
    %403 = vmatpush.msra.mxu0 0.0
    %404 = vmatpush.msra.mxu0 0.0
    %405 = vmatpush.msra.mxu0 0.0
    %406 = vmatpush.msra.mxu0 0.0
    %407 = vmatpush.msra.mxu0 %v393
    %408 = vmatpush.msra.mxu0 %v392
    %409 = vmatpush.msra.mxu0 %v391
    %410 = vmatpush.msra.mxu0 %v390
    %411 = vmatpush.msra.mxu0 %v389
    %412 = vmatpush.msra.mxu0 %v388
    %413 = vmatpush.msra.mxu0 %v387
    %414 = vmatpush.msra.mxu0 %v386
    %415 = vmatmul.f32.gmra.mxu0 %v119
    %v416 = vpop.f32.mrf.mxu0
    %v417 = vadd.f32 %v397, %v416
    %418 = vmatmul.f32.gmra.mxu0 %v122
    %v419 = vpop.f32.mrf.mxu0
    %v420 = vadd.f32 %v397, %v419
    %421 = vdwg.mxu0
    %s422 = scalar_lea.vmem %s3, 192
    %v423 = vld [vmem:[%s422] sm:$0xff]
    %v424 = vld [vmem:[%s422 + $0x8] sm:$0xff]
    %v425 = vld [vmem:[%s422 + $0x10] sm:$0xff]
    %v426 = vld [vmem:[%s422 + $0x18] sm:$0xff]
    %v427 = vld [vmem:[%s422 + $0x20] sm:$0xff]
    %v428 = vld [vmem:[%s422 + $0x28] sm:$0xff]
    %v429 = vld [vmem:[%s422 + $0x30] sm:$0xff]
    %v430 = vld [vmem:[%s422 + $0x38] sm:$0xff]
    %s431 = scalar_lea.vmem %s4, 3
    %v432 = vld [vmem:[%s431] sm:$0x1]
    %v434 = vperm.slane %v432, 0
    %436 = vmatpush.msra.mxu0 0.0
    %437 = vmatpush.msra.mxu0 0.0
    %438 = vmatpush.msra.mxu0 0.0
    %439 = vmatpush.msra.mxu0 0.0
    %440 = vmatpush.msra.mxu0 0.0
    %441 = vmatpush.msra.mxu0 0.0
    %442 = vmatpush.msra.mxu0 0.0
    %443 = vmatpush.msra.mxu0 0.0
    %444 = vmatpush.msra.mxu0 %v430
    %445 = vmatpush.msra.mxu0 %v429
    %446 = vmatpush.msra.mxu0 %v428
    %447 = vmatpush.msra.mxu0 %v427
    %448 = vmatpush.msra.mxu0 %v426
    %449 = vmatpush.msra.mxu0 %v425
    %450 = vmatpush.msra.mxu0 %v424
    %451 = vmatpush.msra.mxu0 %v423
    %452 = vmatmul.f32.gmra.mxu0 %v119
    %v453 = vpop.f32.mrf.mxu0
    %v454 = vadd.f32 %v434, %v453
    %455 = vmatmul.f32.gmra.mxu0 %v122
    %v456 = vpop.f32.mrf.mxu0
    %v457 = vadd.f32 %v434, %v456
    %458 = vdwg.mxu0
    %s459 = scalar_lea.vmem %s3, 320
    %v460 = vld [vmem:[%s459] sm:$0xff]
    %v461 = vld [vmem:[%s459 + $0x8] sm:$0xff]
    %v462 = vld [vmem:[%s459 + $0x10] sm:$0xff]
    %v463 = vld [vmem:[%s459 + $0x18] sm:$0xff]
    %v464 = vld [vmem:[%s459 + $0x20] sm:$0xff]
    %v465 = vld [vmem:[%s459 + $0x28] sm:$0xff]
    %v466 = vld [vmem:[%s459 + $0x30] sm:$0xff]
    %v467 = vld [vmem:[%s459 + $0x38] sm:$0xff]
    %s468 = scalar_lea.vmem %s4, 5
    %v469 = vld [vmem:[%s468] sm:$0x1]
    %v471 = vperm.slane %v469, 0
    %473 = vmatpush.msra.mxu0 0.0
    %474 = vmatpush.msra.mxu0 0.0
    %475 = vmatpush.msra.mxu0 0.0
    %476 = vmatpush.msra.mxu0 0.0
    %477 = vmatpush.msra.mxu0 0.0
    %478 = vmatpush.msra.mxu0 0.0
    %479 = vmatpush.msra.mxu0 0.0
    %480 = vmatpush.msra.mxu0 0.0
    %481 = vmatpush.msra.mxu0 %v467
    %482 = vmatpush.msra.mxu0 %v466
    %483 = vmatpush.msra.mxu0 %v465
    %484 = vmatpush.msra.mxu0 %v464
    %485 = vmatpush.msra.mxu0 %v463
    %486 = vmatpush.msra.mxu0 %v462
    %487 = vmatpush.msra.mxu0 %v461
    %488 = vmatpush.msra.mxu0 %v460
    %489 = vmatmul.f32.gmra.mxu0 %v119
    %v490 = vpop.f32.mrf.mxu0
    %v491 = vadd.f32 %v471, %v490
    %492 = vmatmul.f32.gmra.mxu0 %v122
    %v493 = vpop.f32.mrf.mxu0
    %v494 = vadd.f32 %v471, %v493
    %495 = vdwg.mxu0
    %v497 = vsel %vm227, %v417, 0
    %v500 = vsel %vm227, %v454, 0
    %502 = vmatpush.xpose.msra.mxu0 0.0
    %503 = vmatpush.xpose.msra.mxu0 0.0
    %504 = vmatpush.xpose.msra.mxu0 0.0
    %505 = vmatpush.xpose.msra.mxu0 0.0
    %506 = vmatpush.xpose.msra.mxu0 0.0
    %507 = vmatpush.xpose.msra.mxu0 0.0
    %508 = vmatpush.xpose.msra.mxu0 0.0
    %509 = vmatpush.xpose.msra.mxu0 0.0
    %510 = vmatpush.xpose.msra.mxu0 0.0
    %511 = vmatpush.xpose.msra.mxu0 0.0
    %512 = vmatpush.xpose.msra.mxu0 0.0
    %513 = vmatpush.xpose.msra.mxu0 0.0
    %514 = vmatpush.xpose.msra.mxu0 0.0
    %515 = vmatpush.xpose.msra.mxu0 0.0
    %516 = vmatpush.xpose.msra.mxu0 0.0
    %517 = vmatpush.xpose.msra.mxu0 %v500
    %518 = vmatmul.f32.gmra.mxu0 %v497
    %v519 = vpop.f32.mrf.mxu0
    %v520 = vadd.f32 %v223, %v519
    %521 = vdwg.mxu0
    %v523 = vsel %vm227, %v420, 0
    %v526 = vsel %vm227, %v457, 0
    %528 = vmatpush.xpose.msra.mxu0 0.0
    %529 = vmatpush.xpose.msra.mxu0 0.0
    %530 = vmatpush.xpose.msra.mxu0 0.0
    %531 = vmatpush.xpose.msra.mxu0 0.0
    %532 = vmatpush.xpose.msra.mxu0 0.0
    %533 = vmatpush.xpose.msra.mxu0 0.0
    %534 = vmatpush.xpose.msra.mxu0 0.0
    %535 = vmatpush.xpose.msra.mxu0 0.0
    %536 = vmatpush.xpose.msra.mxu0 0.0
    %537 = vmatpush.xpose.msra.mxu0 0.0
    %538 = vmatpush.xpose.msra.mxu0 0.0
    %539 = vmatpush.xpose.msra.mxu0 0.0
    %540 = vmatpush.xpose.msra.mxu0 0.0
    %541 = vmatpush.xpose.msra.mxu0 0.0
    %542 = vmatpush.xpose.msra.mxu0 0.0
    %543 = vmatpush.xpose.msra.mxu0 %v526
    %544 = vmatmul.f32.gmra.mxu0 %v523
    %v545 = vpop.f32.mrf.mxu0
    %v546 = vadd.f32 %v224, %v545
    %547 = vdwg.mxu0
    %v548 = vsel %vm280, %v520, -inf
    %549 = vmax.xlane.f32.xlu0 %v548
    %v550 = vpop.xlane.xlu0 %549
    %v551 = vsel %vm280, %v546, -inf
    %552 = vmax.xlane.f32.xlu0 %v551
    %v553 = vpop.xlane.xlu0 %552
    %v554 = vsub.f32 %v520, %v550
    %v555 = vsub.f32 %v546, %v553
    %v556 = vmul.f32 %v554, 1.442695
    %v557 = vpow.pop %v556
    %v558 = vmul.f32 %v555, 1.442695
    %v559 = vpow.pop %v558
    %v560 = vsel %vm280, %v557, 0.0
    %561 = vadd.xlane.f32.xlu0 %v560
    %v562 = vpop.xlane.xlu0 %561
    %v563 = vsel %vm280, %v559, 0.0
    %564 = vadd.xlane.f32.xlu0 %v563
    %v565 = vpop.xlane.xlu0 %564
    %v566 = vrcp.pop %v562
    %v567 = vrcp.pop %v565
    %v568 = vmul.f32 %v557, %v566
    %v569 = vmul.f32 %v559, %v567
    %v571 = vsel %vm280, %v568, 0
    %573 = vmatpush.msra.mxu0 0.0
    %574 = vmatpush.msra.mxu0 0.0
    %575 = vmatpush.msra.mxu0 0.0
    %576 = vmatpush.msra.mxu0 0.0
    %577 = vmatpush.msra.mxu0 0.0
    %578 = vmatpush.msra.mxu0 0.0
    %579 = vmatpush.msra.mxu0 0.0
    %580 = vmatpush.msra.mxu0 0.0
    %581 = vmatpush.msra.mxu0 0.0
    %582 = vmatpush.msra.mxu0 0.0
    %583 = vmatpush.msra.mxu0 0.0
    %584 = vmatpush.msra.mxu0 0.0
    %585 = vmatpush.msra.mxu0 0.0
    %586 = vmatpush.msra.mxu0 0.0
    %587 = vmatpush.msra.mxu0 0.0
    %588 = vmatpush.msra.mxu0 %v491
    %589 = vmatmul.f32.gmra.mxu0 %v571
    %v590 = vpop.f32.mrf.mxu0
    %v591 = vadd.f32 0.0, %v590
    %592 = vdwg.mxu0
    %v594 = vsel %vm280, %v569, 0
    %596 = vmatpush.msra.mxu0 0.0
    %597 = vmatpush.msra.mxu0 0.0
    %598 = vmatpush.msra.mxu0 0.0
    %599 = vmatpush.msra.mxu0 0.0
    %600 = vmatpush.msra.mxu0 0.0
    %601 = vmatpush.msra.mxu0 0.0
    %602 = vmatpush.msra.mxu0 0.0
    %603 = vmatpush.msra.mxu0 0.0
    %604 = vmatpush.msra.mxu0 0.0
    %605 = vmatpush.msra.mxu0 0.0
    %606 = vmatpush.msra.mxu0 0.0
    %607 = vmatpush.msra.mxu0 0.0
    %608 = vmatpush.msra.mxu0 0.0
    %609 = vmatpush.msra.mxu0 0.0
    %610 = vmatpush.msra.mxu0 0.0
    %611 = vmatpush.msra.mxu0 %v494
    %612 = vmatmul.f32.gmra.mxu0 %v594
    %v613 = vpop.f32.mrf.mxu0
    %v614 = vadd.f32 0.0, %v613
    %615 = vdwg.mxu0
    %s616 = scalar_lea.vmem %s5, 32
    %v617 = vld [vmem:[%s616] sm:$0xff]
    %v618 = vld [vmem:[%s616 + $0x8] sm:$0xff]
    %v619 = vld [vmem:[%s616 + $0x10] sm:$0xff]
    %v620 = vld [vmem:[%s616 + $0x18] sm:$0xff]
    %v622 = vsel %vm227, %v591, 0
    %v625 = vsel %vm227, %v614, 0
    %627 = vmatpush.msra.mxu0 0.0
    %628 = vmatpush.msra.mxu0 0.0
    %629 = vmatpush.msra.mxu0 0.0
    %630 = vmatpush.msra.mxu0 0.0
    %631 = vmatpush.msra.mxu0 0.0
    %632 = vmatpush.msra.mxu0 0.0
    %633 = vmatpush.msra.mxu0 0.0
    %634 = vmatpush.msra.mxu0 0.0
    %635 = vmatpush.msra.mxu0 0.0
    %636 = vmatpush.msra.mxu0 0.0
    %637 = vmatpush.msra.mxu0 0.0
    %638 = vmatpush.msra.mxu0 0.0
    %639 = vmatpush.msra.mxu0 %v620
    %640 = vmatpush.msra.mxu0 %v619
    %641 = vmatpush.msra.mxu0 %v618
    %642 = vmatpush.msra.mxu0 %v617
    %643 = vmatmul.f32.gmra.mxu0 %v622
    %v644 = vpop.f32.mrf.mxu0
    %v645 = vadd.f32 0.0, %v644
    %646 = vmatmul.f32.gmra.mxu0 %v625
    %v647 = vpop.f32.mrf.mxu0
    %v648 = vadd.f32 0.0, %v647
    %649 = vdwg.mxu0
    %v650 = vadd.f32 %v383, %v645
    %v651 = vadd.f32 %v384, %v648
    %v652 = vadd.f32 %v101, %v650
    %v653 = vadd.f32 %v102, %v651
    %v654 = vsel %vm45, %v652, 0.0
    %655 = vadd.xlane.f32.xlu0 %v654
    %v656 = vpop.xlane.xlu0 %655
    %v657 = vsel %vm45, %v653, 0.0
    %658 = vadd.xlane.f32.xlu0 %v657
    %v659 = vpop.xlane.xlu0 %658
    %v660 = vmul.f32 %v656, %v58
    %v661 = vmul.f32 %v659, %v58
    %v662 = vsub.f32 %v652, %v660
    %v663 = vsub.f32 %v653, %v661
    %v664 = vmul.f32 %v662, %v662
    %v665 = vmul.f32 %v663, %v663
    %v666 = vsel %vm45, %v664, 0.0
    %667 = vadd.xlane.f32.xlu0 %v666
    %v668 = vpop.xlane.xlu0 %667
    %v669 = vsel %vm45, %v665, 0.0
    %670 = vadd.xlane.f32.xlu0 %v669
    %v671 = vpop.xlane.xlu0 %670
    %v672 = vmul.f32 %v668, %v58
    %v673 = vmul.f32 %v671, %v58
    %v674 = vadd.f32 %v672, 1e-12
    %v675 = vadd.f32 %v673, 1e-12
    %v676 = vrsqrt.pop %v674
    %v677 = vmul.f32 %v676, %v674
    %v678 = vmul.f32 %v677, %v676
    %v679 = vmul.f32 0.5, %v678
    %v680 = vsub.f32 1.5, %v679
    %v681 = vmul.f32 %v676, %v680
    %vm682 = vweird.f32 %v674
    %vm683 = vweird.f32 %v676
    %vm684 = vmor %vm682, %vm683
    %v685 = vsel %vm684, %v676, %v681
    %v686 = vrsqrt.pop %v675
    %v687 = vmul.f32 %v686, %v675
    %v688 = vmul.f32 %v687, %v686
    %v689 = vmul.f32 0.5, %v688
    %v690 = vsub.f32 1.5, %v689
    %v691 = vmul.f32 %v686, %v690
    %vm692 = vweird.f32 %v675
    %vm693 = vweird.f32 %v686
    %vm694 = vmor %vm692, %vm693
    %v695 = vsel %vm694, %v686, %v691
    %v696 = vmul.f32 %v662, %v685
    %v697 = vmul.f32 %v663, %v695
    %v698 = vperm.slane %v105, 1
    %v699 = vmul.f32 %v696, %v698
    %v700 = vmul.f32 %v697, %v698
    %v701 = vperm.slane %v105, 2
    %v702 = vadd.f32 %v699, %v701
    %v703 = vadd.f32 %v700, %v701
    %v704 = vld [vmem:[%s7] sm:$0xff]
    %v705 = vld [vmem:[%s7 + $0x8] sm:$0xff]
    %v706 = vld [vmem:[%s7 + $0x10] sm:$0xff]
    %v707 = vld [vmem:[%s7 + $0x18] sm:$0xff]
    %v708 = vld [vmem:[%s7 + $0x20] sm:$0xff]
    %v709 = vld [vmem:[%s7 + $0x28] sm:$0xff]
    %v710 = vld [vmem:[%s7 + $0x30] sm:$0xff]
    %v711 = vld [vmem:[%s7 + $0x38] sm:$0xff]
    %v712 = vld [vmem:[%s8] sm:$0x1]
    %v714 = vperm.slane %v712, 0
    %v717 = vsel %vm45, %v702, 0
    %v720 = vsel %vm45, %v703, 0
    %722 = vmatpush.msra.mxu0 0.0
    %723 = vmatpush.msra.mxu0 0.0
    %724 = vmatpush.msra.mxu0 0.0
    %725 = vmatpush.msra.mxu0 0.0
    %726 = vmatpush.msra.mxu0 0.0
    %727 = vmatpush.msra.mxu0 0.0
    %728 = vmatpush.msra.mxu0 0.0
    %729 = vmatpush.msra.mxu0 0.0
    %730 = vmatpush.msra.mxu0 %v711
    %731 = vmatpush.msra.mxu0 %v710
    %732 = vmatpush.msra.mxu0 %v709
    %733 = vmatpush.msra.mxu0 %v708
    %734 = vmatpush.msra.mxu0 %v707
    %735 = vmatpush.msra.mxu0 %v706
    %736 = vmatpush.msra.mxu0 %v705
    %737 = vmatpush.msra.mxu0 %v704
    %738 = vmatmul.f32.gmra.mxu0 %v717
    %v739 = vpop.f32.mrf.mxu0
    %v740 = vadd.f32 %v714, %v739
    %741 = vmatmul.f32.gmra.mxu0 %v720
    %v742 = vpop.f32.mrf.mxu0
    %v743 = vadd.f32 %v714, %v742
    %744 = vdwg.mxu0
    %v745 = vmul.f32 %v740, 0.5
    %v746 = vmul.f32 %v743, 0.5
    %v747 = vmul.f32 %v740, 0.044715
    %v748 = vmul.f32 %v743, 0.044715
    %v749 = vmul.f32 %v747, %v740
    %v750 = vmul.f32 %v748, %v743
    %v751 = vmul.f32 %v749, %v740
    %v752 = vmul.f32 %v750, %v743
    %v753 = vadd.f32 %v740, %v751
    %v754 = vadd.f32 %v743, %v752
    %v755 = vmul.f32 %v753, 0.7978846
    %v756 = vmul.f32 %v754, 0.7978846
    %v757 = vtanh.pop %v755
    %v758 = vtanh.pop %v756
    %v759 = vadd.f32 %v757, 1.0
    %v760 = vadd.f32 %v758, 1.0
    %v761 = vmul.f32 %v745, %v759
    %v762 = vmul.f32 %v746, %v760
    %v763 = vld [vmem:[%s9] sm:$0xff]
    %v764 = vld [vmem:[%s9 + $0x8] sm:$0xff]
    %v765 = vld [vmem:[%s9 + $0x10] sm:$0xff]
    %v766 = vld [vmem:[%s9 + $0x18] sm:$0xff]
    %v767 = vld [vmem:[%s9 + $0x20] sm:$0xff]
    %v768 = vld [vmem:[%s9 + $0x28] sm:$0xff]
    %v769 = vld [vmem:[%s9 + $0x30] sm:$0xff]
    %v770 = vld [vmem:[%s9 + $0x38] sm:$0xff]
    %v771 = vld [vmem:[%s9 + $0x40] sm:$0xff]
    %v772 = vld [vmem:[%s9 + $0x48] sm:$0xff]
    %v773 = vld [vmem:[%s9 + $0x50] sm:$0xff]
    %v774 = vld [vmem:[%s9 + $0x58] sm:$0xff]
    %v775 = vld [vmem:[%s9 + $0x60] sm:$0xff]
    %v776 = vld [vmem:[%s9 + $0x68] sm:$0xff]
    %v777 = vld [vmem:[%s9 + $0x70] sm:$0xff]
    %v778 = vld [vmem:[%s9 + $0x78] sm:$0xff]
    %v779 = vperm.slane %v105, 3
    %780 = vmatpush.msra.mxu0 %v778
    %781 = vmatpush.msra.mxu0 %v777
    %782 = vmatpush.msra.mxu0 %v776
    %783 = vmatpush.msra.mxu0 %v775
    %784 = vmatpush.msra.mxu0 %v774
    %785 = vmatpush.msra.mxu0 %v773
    %786 = vmatpush.msra.mxu0 %v772
    %787 = vmatpush.msra.mxu0 %v771
    %788 = vmatpush.msra.mxu0 %v770
    %789 = vmatpush.msra.mxu0 %v769
    %790 = vmatpush.msra.mxu0 %v768
    %791 = vmatpush.msra.mxu0 %v767
    %792 = vmatpush.msra.mxu0 %v766
    %793 = vmatpush.msra.mxu0 %v765
    %794 = vmatpush.msra.mxu0 %v764
    %795 = vmatpush.msra.mxu0 %v763
    %796 = vmatmul.f32.gmra.mxu0 %v761
    %v797 = vpop.f32.mrf.mxu0
    %v798 = vadd.f32 %v779, %v797
    %799 = vmatmul.f32.gmra.mxu0 %v762
    %v800 = vpop.f32.mrf.mxu0
    %v801 = vadd.f32 %v779, %v800
    %802 = vdwg.mxu0
    %v803 = vadd.f32 %v702, %v798
    %v804 = vadd.f32 %v703, %v801
    %v805 = vsel %vm45, %v803, 0.0
    %806 = vadd.xlane.f32.xlu0 %v805
    %v807 = vpop.xlane.xlu0 %806
    %v808 = vsel %vm45, %v804, 0.0
    %809 = vadd.xlane.f32.xlu0 %v808
    %v810 = vpop.xlane.xlu0 %809
    %v811 = vmul.f32 %v807, %v58
    %v812 = vmul.f32 %v810, %v58
    %v813 = vsub.f32 %v803, %v811
    %v814 = vsub.f32 %v804, %v812
    %v815 = vmul.f32 %v813, %v813
    %v816 = vmul.f32 %v814, %v814
    %v817 = vsel %vm45, %v815, 0.0
    %818 = vadd.xlane.f32.xlu0 %v817
    %v819 = vpop.xlane.xlu0 %818
    %v820 = vsel %vm45, %v816, 0.0
    %821 = vadd.xlane.f32.xlu0 %v820
    %v822 = vpop.xlane.xlu0 %821
    %v823 = vmul.f32 %v819, %v58
    %v824 = vmul.f32 %v822, %v58
    %v825 = vadd.f32 %v823, 1e-12
    %v826 = vadd.f32 %v824, 1e-12
    %v827 = vrsqrt.pop %v825
    %v828 = vmul.f32 %v827, %v825
    %v829 = vmul.f32 %v828, %v827
    %v830 = vmul.f32 0.5, %v829
    %v831 = vsub.f32 1.5, %v830
    %v832 = vmul.f32 %v827, %v831
    %vm833 = vweird.f32 %v825
    %vm834 = vweird.f32 %v827
    %vm835 = vmor %vm833, %vm834
    %v836 = vsel %vm835, %v827, %v832
    %v837 = vrsqrt.pop %v826
    %v838 = vmul.f32 %v837, %v826
    %v839 = vmul.f32 %v838, %v837
    %v840 = vmul.f32 0.5, %v839
    %v841 = vsub.f32 1.5, %v840
    %v842 = vmul.f32 %v837, %v841
    %vm843 = vweird.f32 %v826
    %vm844 = vweird.f32 %v837
    %vm845 = vmor %vm843, %vm844
    %v846 = vsel %vm845, %v837, %v842
    %v847 = vmul.f32 %v813, %v836
    %v848 = vmul.f32 %v814, %v846
    %v849 = vperm.slane %v105, 4
    %v850 = vmul.f32 %v847, %v849
    %v851 = vmul.f32 %v848, %v849
    %v852 = vperm.slane %v105, 5
    %v853 = vadd.f32 %v850, %v852
    %v854 = vadd.f32 %v851, %v852
    %s855 = scalar_lea.vmem %s6, 8
    %v856 = vld [vmem:[%s855] sm:$0x3f]
    %s857 = scalar_lea.vmem %s3, 384
    %v858 = vld [vmem:[%s857] sm:$0xff]
    %v859 = vld [vmem:[%s857 + $0x8] sm:$0xff]
    %v860 = vld [vmem:[%s857 + $0x10] sm:$0xff]
    %v861 = vld [vmem:[%s857 + $0x18] sm:$0xff]
    %v862 = vld [vmem:[%s857 + $0x20] sm:$0xff]
    %v863 = vld [vmem:[%s857 + $0x28] sm:$0xff]
    %v864 = vld [vmem:[%s857 + $0x30] sm:$0xff]
    %v865 = vld [vmem:[%s857 + $0x38] sm:$0xff]
    %s866 = scalar_lea.vmem %s4, 6
    %v867 = vld [vmem:[%s866] sm:$0x1]
    %v869 = vperm.slane %v867, 0
    %v872 = vsel %vm45, %v853, 0
    %v875 = vsel %vm45, %v854, 0
    %877 = vmatpush.msra.mxu0 0.0
    %878 = vmatpush.msra.mxu0 0.0
    %879 = vmatpush.msra.mxu0 0.0
    %880 = vmatpush.msra.mxu0 0.0
    %881 = vmatpush.msra.mxu0 0.0
    %882 = vmatpush.msra.mxu0 0.0
    %883 = vmatpush.msra.mxu0 0.0
    %884 = vmatpush.msra.mxu0 0.0
    %885 = vmatpush.msra.mxu0 %v865
    %886 = vmatpush.msra.mxu0 %v864
    %887 = vmatpush.msra.mxu0 %v863
    %888 = vmatpush.msra.mxu0 %v862
    %889 = vmatpush.msra.mxu0 %v861
    %890 = vmatpush.msra.mxu0 %v860
    %891 = vmatpush.msra.mxu0 %v859
    %892 = vmatpush.msra.mxu0 %v858
    %893 = vmatmul.f32.gmra.mxu0 %v872
    %v894 = vpop.f32.mrf.mxu0
    %v895 = vadd.f32 %v869, %v894
    %896 = vmatmul.f32.gmra.mxu0 %v875
    %v897 = vpop.f32.mrf.mxu0
    %v898 = vadd.f32 %v869, %v897
    %899 = vdwg.mxu0
    %s900 = scalar_lea.vmem %s3, 512
    %v901 = vld [vmem:[%s900] sm:$0xff]
    %v902 = vld [vmem:[%s900 + $0x8] sm:$0xff]
    %v903 = vld [vmem:[%s900 + $0x10] sm:$0xff]
    %v904 = vld [vmem:[%s900 + $0x18] sm:$0xff]
    %v905 = vld [vmem:[%s900 + $0x20] sm:$0xff]
    %v906 = vld [vmem:[%s900 + $0x28] sm:$0xff]
    %v907 = vld [vmem:[%s900 + $0x30] sm:$0xff]
    %v908 = vld [vmem:[%s900 + $0x38] sm:$0xff]
    %s909 = scalar_lea.vmem %s4, 8
    %v910 = vld [vmem:[%s909] sm:$0x1]
    %v912 = vperm.slane %v910, 0
    %914 = vmatpush.msra.mxu0 0.0
    %915 = vmatpush.msra.mxu0 0.0
    %916 = vmatpush.msra.mxu0 0.0
    %917 = vmatpush.msra.mxu0 0.0
    %918 = vmatpush.msra.mxu0 0.0
    %919 = vmatpush.msra.mxu0 0.0
    %920 = vmatpush.msra.mxu0 0.0
    %921 = vmatpush.msra.mxu0 0.0
    %922 = vmatpush.msra.mxu0 %v908
    %923 = vmatpush.msra.mxu0 %v907
    %924 = vmatpush.msra.mxu0 %v906
    %925 = vmatpush.msra.mxu0 %v905
    %926 = vmatpush.msra.mxu0 %v904
    %927 = vmatpush.msra.mxu0 %v903
    %928 = vmatpush.msra.mxu0 %v902
    %929 = vmatpush.msra.mxu0 %v901
    %930 = vmatmul.f32.gmra.mxu0 %v872
    %v931 = vpop.f32.mrf.mxu0
    %v932 = vadd.f32 %v912, %v931
    %933 = vmatmul.f32.gmra.mxu0 %v875
    %v934 = vpop.f32.mrf.mxu0
    %v935 = vadd.f32 %v912, %v934
    %936 = vdwg.mxu0
    %s937 = scalar_lea.vmem %s3, 640
    %v938 = vld [vmem:[%s937] sm:$0xff]
    %v939 = vld [vmem:[%s937 + $0x8] sm:$0xff]
    %v940 = vld [vmem:[%s937 + $0x10] sm:$0xff]
    %v941 = vld [vmem:[%s937 + $0x18] sm:$0xff]
    %v942 = vld [vmem:[%s937 + $0x20] sm:$0xff]
    %v943 = vld [vmem:[%s937 + $0x28] sm:$0xff]
    %v944 = vld [vmem:[%s937 + $0x30] sm:$0xff]
    %v945 = vld [vmem:[%s937 + $0x38] sm:$0xff]
    %s946 = scalar_lea.vmem %s4, 10
    %v947 = vld [vmem:[%s946] sm:$0x1]
    %v949 = vperm.slane %v947, 0
    %951 = vmatpush.msra.mxu0 0.0
    %952 = vmatpush.msra.mxu0 0.0
    %953 = vmatpush.msra.mxu0 0.0
    %954 = vmatpush.msra.mxu0 0.0
    %955 = vmatpush.msra.mxu0 0.0
    %956 = vmatpush.msra.mxu0 0.0
    %957 = vmatpush.msra.mxu0 0.0
    %958 = vmatpush.msra.mxu0 0.0
    %959 = vmatpush.msra.mxu0 %v945
    %960 = vmatpush.msra.mxu0 %v944
    %961 = vmatpush.msra.mxu0 %v943
    %962 = vmatpush.msra.mxu0 %v942
    %963 = vmatpush.msra.mxu0 %v941
    %964 = vmatpush.msra.mxu0 %v940
    %965 = vmatpush.msra.mxu0 %v939
    %966 = vmatpush.msra.mxu0 %v938
    %967 = vmatmul.f32.gmra.mxu0 %v872
    %v968 = vpop.f32.mrf.mxu0
    %v969 = vadd.f32 %v949, %v968
    %970 = vmatmul.f32.gmra.mxu0 %v875
    %v971 = vpop.f32.mrf.mxu0
    %v972 = vadd.f32 %v949, %v971
    %973 = vdwg.mxu0
    %v975 = vsel %vm227, %v895, 0
    %v978 = vsel %vm227, %v932, 0
    %980 = vmatpush.xpose.msra.mxu0 0.0
    %981 = vmatpush.xpose.msra.mxu0 0.0
    %982 = vmatpush.xpose.msra.mxu0 0.0
    %983 = vmatpush.xpose.msra.mxu0 0.0
    %984 = vmatpush.xpose.msra.mxu0 0.0
    %985 = vmatpush.xpose.msra.mxu0 0.0
    %986 = vmatpush.xpose.msra.mxu0 0.0
    %987 = vmatpush.xpose.msra.mxu0 0.0
    %988 = vmatpush.xpose.msra.mxu0 0.0
    %989 = vmatpush.xpose.msra.mxu0 0.0
    %990 = vmatpush.xpose.msra.mxu0 0.0
    %991 = vmatpush.xpose.msra.mxu0 0.0
    %992 = vmatpush.xpose.msra.mxu0 0.0
    %993 = vmatpush.xpose.msra.mxu0 0.0
    %994 = vmatpush.xpose.msra.mxu0 0.0
    %995 = vmatpush.xpose.msra.mxu0 %v978
    %996 = vmatmul.f32.gmra.mxu0 %v975
    %v997 = vpop.f32.mrf.mxu0
    %v998 = vadd.f32 %v223, %v997
    %999 = vdwg.mxu0
    %v1001 = vsel %vm227, %v898, 0
    %v1004 = vsel %vm227, %v935, 0
    %1006 = vmatpush.xpose.msra.mxu0 0.0
    %1007 = vmatpush.xpose.msra.mxu0 0.0
    %1008 = vmatpush.xpose.msra.mxu0 0.0
    %1009 = vmatpush.xpose.msra.mxu0 0.0
    %1010 = vmatpush.xpose.msra.mxu0 0.0
    %1011 = vmatpush.xpose.msra.mxu0 0.0
    %1012 = vmatpush.xpose.msra.mxu0 0.0
    %1013 = vmatpush.xpose.msra.mxu0 0.0
    %1014 = vmatpush.xpose.msra.mxu0 0.0
    %1015 = vmatpush.xpose.msra.mxu0 0.0
    %1016 = vmatpush.xpose.msra.mxu0 0.0
    %1017 = vmatpush.xpose.msra.mxu0 0.0
    %1018 = vmatpush.xpose.msra.mxu0 0.0
    %1019 = vmatpush.xpose.msra.mxu0 0.0
    %1020 = vmatpush.xpose.msra.mxu0 0.0
    %1021 = vmatpush.xpose.msra.mxu0 %v1004
    %1022 = vmatmul.f32.gmra.mxu0 %v1001
    %v1023 = vpop.f32.mrf.mxu0
    %v1024 = vadd.f32 %v224, %v1023
    %1025 = vdwg.mxu0
    %v1026 = vsel %vm280, %v998, -inf
    %1027 = vmax.xlane.f32.xlu0 %v1026
    %v1028 = vpop.xlane.xlu0 %1027
    %v1029 = vsel %vm280, %v1024, -inf
    %1030 = vmax.xlane.f32.xlu0 %v1029
    %v1031 = vpop.xlane.xlu0 %1030
    %v1032 = vsub.f32 %v998, %v1028
    %v1033 = vsub.f32 %v1024, %v1031
    %v1034 = vmul.f32 %v1032, 1.442695
    %v1035 = vpow.pop %v1034
    %v1036 = vmul.f32 %v1033, 1.442695
    %v1037 = vpow.pop %v1036
    %v1038 = vsel %vm280, %v1035, 0.0
    %1039 = vadd.xlane.f32.xlu0 %v1038
    %v1040 = vpop.xlane.xlu0 %1039
    %v1041 = vsel %vm280, %v1037, 0.0
    %1042 = vadd.xlane.f32.xlu0 %v1041
    %v1043 = vpop.xlane.xlu0 %1042
    %v1044 = vrcp.pop %v1040
    %v1045 = vrcp.pop %v1043
    %v1046 = vmul.f32 %v1035, %v1044
    %v1047 = vmul.f32 %v1037, %v1045
    %v1049 = vsel %vm280, %v1046, 0
    %1051 = vmatpush.msra.mxu0 0.0
    %1052 = vmatpush.msra.mxu0 0.0
    %1053 = vmatpush.msra.mxu0 0.0
    %1054 = vmatpush.msra.mxu0 0.0
    %1055 = vmatpush.msra.mxu0 0.0
    %1056 = vmatpush.msra.mxu0 0.0
    %1057 = vmatpush.msra.mxu0 0.0
    %1058 = vmatpush.msra.mxu0 0.0
    %1059 = vmatpush.msra.mxu0 0.0
    %1060 = vmatpush.msra.mxu0 0.0
    %1061 = vmatpush.msra.mxu0 0.0
    %1062 = vmatpush.msra.mxu0 0.0
    %1063 = vmatpush.msra.mxu0 0.0
    %1064 = vmatpush.msra.mxu0 0.0
    %1065 = vmatpush.msra.mxu0 0.0
    %1066 = vmatpush.msra.mxu0 %v969
    %1067 = vmatmul.f32.gmra.mxu0 %v1049
    %v1068 = vpop.f32.mrf.mxu0
    %v1069 = vadd.f32 0.0, %v1068
    %1070 = vdwg.mxu0
    %v1072 = vsel %vm280, %v1047, 0
    %1074 = vmatpush.msra.mxu0 0.0
    %1075 = vmatpush.msra.mxu0 0.0
    %1076 = vmatpush.msra.mxu0 0.0
    %1077 = vmatpush.msra.mxu0 0.0
    %1078 = vmatpush.msra.mxu0 0.0
    %1079 = vmatpush.msra.mxu0 0.0
    %1080 = vmatpush.msra.mxu0 0.0
    %1081 = vmatpush.msra.mxu0 0.0
    %1082 = vmatpush.msra.mxu0 0.0
    %1083 = vmatpush.msra.mxu0 0.0
    %1084 = vmatpush.msra.mxu0 0.0
    %1085 = vmatpush.msra.mxu0 0.0
    %1086 = vmatpush.msra.mxu0 0.0
    %1087 = vmatpush.msra.mxu0 0.0
    %1088 = vmatpush.msra.mxu0 0.0
    %1089 = vmatpush.msra.mxu0 %v972
    %1090 = vmatmul.f32.gmra.mxu0 %v1072
    %v1091 = vpop.f32.mrf.mxu0
    %v1092 = vadd.f32 0.0, %v1091
    %1093 = vdwg.mxu0
    %s1094 = scalar_lea.vmem %s5, 64
    %v1095 = vld [vmem:[%s1094] sm:$0xff]
    %v1096 = vld [vmem:[%s1094 + $0x8] sm:$0xff]
    %v1097 = vld [vmem:[%s1094 + $0x10] sm:$0xff]
    %v1098 = vld [vmem:[%s1094 + $0x18] sm:$0xff]
    %v1100 = vsel %vm227, %v1069, 0
    %v1103 = vsel %vm227, %v1092, 0
    %1105 = vmatpush.msra.mxu0 0.0
    %1106 = vmatpush.msra.mxu0 0.0
    %1107 = vmatpush.msra.mxu0 0.0
    %1108 = vmatpush.msra.mxu0 0.0
    %1109 = vmatpush.msra.mxu0 0.0
    %1110 = vmatpush.msra.mxu0 0.0
    %1111 = vmatpush.msra.mxu0 0.0
    %1112 = vmatpush.msra.mxu0 0.0
    %1113 = vmatpush.msra.mxu0 0.0
    %1114 = vmatpush.msra.mxu0 0.0
    %1115 = vmatpush.msra.mxu0 0.0
    %1116 = vmatpush.msra.mxu0 0.0
    %1117 = vmatpush.msra.mxu0 %v1098
    %1118 = vmatpush.msra.mxu0 %v1097
    %1119 = vmatpush.msra.mxu0 %v1096
    %1120 = vmatpush.msra.mxu0 %v1095
    %1121 = vmatmul.f32.gmra.mxu0 %v1100
    %v1122 = vpop.f32.mrf.mxu0
    %v1123 = vadd.f32 0.0, %v1122
    %1124 = vmatmul.f32.gmra.mxu0 %v1103
    %v1125 = vpop.f32.mrf.mxu0
    %v1126 = vadd.f32 0.0, %v1125
    %1127 = vdwg.mxu0
    %v1128 = vperm.slane %v856, 0
    %v1129 = vadd.f32 %v1128, %v1123
    %v1130 = vadd.f32 %v1128, %v1126
    %s1131 = scalar_lea.vmem %s3, 448
    %v1132 = vld [vmem:[%s1131] sm:$0xff]
    %v1133 = vld [vmem:[%s1131 + $0x8] sm:$0xff]
    %v1134 = vld [vmem:[%s1131 + $0x10] sm:$0xff]
    %v1135 = vld [vmem:[%s1131 + $0x18] sm:$0xff]
    %v1136 = vld [vmem:[%s1131 + $0x20] sm:$0xff]
    %v1137 = vld [vmem:[%s1131 + $0x28] sm:$0xff]
    %v1138 = vld [vmem:[%s1131 + $0x30] sm:$0xff]
    %v1139 = vld [vmem:[%s1131 + $0x38] sm:$0xff]
    %s1140 = scalar_lea.vmem %s4, 7
    %v1141 = vld [vmem:[%s1140] sm:$0x1]
    %v1143 = vperm.slane %v1141, 0
    %1145 = vmatpush.msra.mxu0 0.0
    %1146 = vmatpush.msra.mxu0 0.0
    %1147 = vmatpush.msra.mxu0 0.0
    %1148 = vmatpush.msra.mxu0 0.0
    %1149 = vmatpush.msra.mxu0 0.0
    %1150 = vmatpush.msra.mxu0 0.0
    %1151 = vmatpush.msra.mxu0 0.0
    %1152 = vmatpush.msra.mxu0 0.0
    %1153 = vmatpush.msra.mxu0 %v1139
    %1154 = vmatpush.msra.mxu0 %v1138
    %1155 = vmatpush.msra.mxu0 %v1137
    %1156 = vmatpush.msra.mxu0 %v1136
    %1157 = vmatpush.msra.mxu0 %v1135
    %1158 = vmatpush.msra.mxu0 %v1134
    %1159 = vmatpush.msra.mxu0 %v1133
    %1160 = vmatpush.msra.mxu0 %v1132
    %1161 = vmatmul.f32.gmra.mxu0 %v872
    %v1162 = vpop.f32.mrf.mxu0
    %v1163 = vadd.f32 %v1143, %v1162
    %1164 = vmatmul.f32.gmra.mxu0 %v875
    %v1165 = vpop.f32.mrf.mxu0
    %v1166 = vadd.f32 %v1143, %v1165
    %1167 = vdwg.mxu0
    %s1168 = scalar_lea.vmem %s3, 576
    %v1169 = vld [vmem:[%s1168] sm:$0xff]
    %v1170 = vld [vmem:[%s1168 + $0x8] sm:$0xff]
    %v1171 = vld [vmem:[%s1168 + $0x10] sm:$0xff]
    %v1172 = vld [vmem:[%s1168 + $0x18] sm:$0xff]
    %v1173 = vld [vmem:[%s1168 + $0x20] sm:$0xff]
    %v1174 = vld [vmem:[%s1168 + $0x28] sm:$0xff]
    %v1175 = vld [vmem:[%s1168 + $0x30] sm:$0xff]
    %v1176 = vld [vmem:[%s1168 + $0x38] sm:$0xff]
    %s1177 = scalar_lea.vmem %s4, 9
    %v1178 = vld [vmem:[%s1177] sm:$0x1]
    %v1180 = vperm.slane %v1178, 0
    %1182 = vmatpush.msra.mxu0 0.0
    %1183 = vmatpush.msra.mxu0 0.0
    %1184 = vmatpush.msra.mxu0 0.0
    %1185 = vmatpush.msra.mxu0 0.0
    %1186 = vmatpush.msra.mxu0 0.0
    %1187 = vmatpush.msra.mxu0 0.0
    %1188 = vmatpush.msra.mxu0 0.0
    %1189 = vmatpush.msra.mxu0 0.0
    %1190 = vmatpush.msra.mxu0 %v1176
    %1191 = vmatpush.msra.mxu0 %v1175
    %1192 = vmatpush.msra.mxu0 %v1174
    %1193 = vmatpush.msra.mxu0 %v1173
    %1194 = vmatpush.msra.mxu0 %v1172
    %1195 = vmatpush.msra.mxu0 %v1171
    %1196 = vmatpush.msra.mxu0 %v1170
    %1197 = vmatpush.msra.mxu0 %v1169
    %1198 = vmatmul.f32.gmra.mxu0 %v872
    %v1199 = vpop.f32.mrf.mxu0
    %v1200 = vadd.f32 %v1180, %v1199
    %1201 = vmatmul.f32.gmra.mxu0 %v875
    %v1202 = vpop.f32.mrf.mxu0
    %v1203 = vadd.f32 %v1180, %v1202
    %1204 = vdwg.mxu0
    %s1205 = scalar_lea.vmem %s3, 704
    %v1206 = vld [vmem:[%s1205] sm:$0xff]
    %v1207 = vld [vmem:[%s1205 + $0x8] sm:$0xff]
    %v1208 = vld [vmem:[%s1205 + $0x10] sm:$0xff]
    %v1209 = vld [vmem:[%s1205 + $0x18] sm:$0xff]
    %v1210 = vld [vmem:[%s1205 + $0x20] sm:$0xff]
    %v1211 = vld [vmem:[%s1205 + $0x28] sm:$0xff]
    %v1212 = vld [vmem:[%s1205 + $0x30] sm:$0xff]
    %v1213 = vld [vmem:[%s1205 + $0x38] sm:$0xff]
    %s1214 = scalar_lea.vmem %s4, 11
    %v1215 = vld [vmem:[%s1214] sm:$0x1]
    %v1217 = vperm.slane %v1215, 0
    %1219 = vmatpush.msra.mxu0 0.0
    %1220 = vmatpush.msra.mxu0 0.0
    %1221 = vmatpush.msra.mxu0 0.0
    %1222 = vmatpush.msra.mxu0 0.0
    %1223 = vmatpush.msra.mxu0 0.0
    %1224 = vmatpush.msra.mxu0 0.0
    %1225 = vmatpush.msra.mxu0 0.0
    %1226 = vmatpush.msra.mxu0 0.0
    %1227 = vmatpush.msra.mxu0 %v1213
    %1228 = vmatpush.msra.mxu0 %v1212
    %1229 = vmatpush.msra.mxu0 %v1211
    %1230 = vmatpush.msra.mxu0 %v1210
    %1231 = vmatpush.msra.mxu0 %v1209
    %1232 = vmatpush.msra.mxu0 %v1208
    %1233 = vmatpush.msra.mxu0 %v1207
    %1234 = vmatpush.msra.mxu0 %v1206
    %1235 = vmatmul.f32.gmra.mxu0 %v872
    %v1236 = vpop.f32.mrf.mxu0
    %v1237 = vadd.f32 %v1217, %v1236
    %1238 = vmatmul.f32.gmra.mxu0 %v875
    %v1239 = vpop.f32.mrf.mxu0
    %v1240 = vadd.f32 %v1217, %v1239
    %1241 = vdwg.mxu0
    %v1243 = vsel %vm227, %v1163, 0
    %v1246 = vsel %vm227, %v1200, 0
    %1248 = vmatpush.xpose.msra.mxu0 0.0
    %1249 = vmatpush.xpose.msra.mxu0 0.0
    %1250 = vmatpush.xpose.msra.mxu0 0.0
    %1251 = vmatpush.xpose.msra.mxu0 0.0
    %1252 = vmatpush.xpose.msra.mxu0 0.0
    %1253 = vmatpush.xpose.msra.mxu0 0.0
    %1254 = vmatpush.xpose.msra.mxu0 0.0
    %1255 = vmatpush.xpose.msra.mxu0 0.0
    %1256 = vmatpush.xpose.msra.mxu0 0.0
    %1257 = vmatpush.xpose.msra.mxu0 0.0
    %1258 = vmatpush.xpose.msra.mxu0 0.0
    %1259 = vmatpush.xpose.msra.mxu0 0.0
    %1260 = vmatpush.xpose.msra.mxu0 0.0
    %1261 = vmatpush.xpose.msra.mxu0 0.0
    %1262 = vmatpush.xpose.msra.mxu0 0.0
    %1263 = vmatpush.xpose.msra.mxu0 %v1246
    %1264 = vmatmul.f32.gmra.mxu0 %v1243
    %v1265 = vpop.f32.mrf.mxu0
    %v1266 = vadd.f32 %v223, %v1265
    %1267 = vdwg.mxu0
    %v1269 = vsel %vm227, %v1166, 0
    %v1272 = vsel %vm227, %v1203, 0
    %1274 = vmatpush.xpose.msra.mxu0 0.0
    %1275 = vmatpush.xpose.msra.mxu0 0.0
    %1276 = vmatpush.xpose.msra.mxu0 0.0
    %1277 = vmatpush.xpose.msra.mxu0 0.0
    %1278 = vmatpush.xpose.msra.mxu0 0.0
    %1279 = vmatpush.xpose.msra.mxu0 0.0
    %1280 = vmatpush.xpose.msra.mxu0 0.0
    %1281 = vmatpush.xpose.msra.mxu0 0.0
    %1282 = vmatpush.xpose.msra.mxu0 0.0
    %1283 = vmatpush.xpose.msra.mxu0 0.0
    %1284 = vmatpush.xpose.msra.mxu0 0.0
    %1285 = vmatpush.xpose.msra.mxu0 0.0
    %1286 = vmatpush.xpose.msra.mxu0 0.0
    %1287 = vmatpush.xpose.msra.mxu0 0.0
    %1288 = vmatpush.xpose.msra.mxu0 0.0
    %1289 = vmatpush.xpose.msra.mxu0 %v1272
    %1290 = vmatmul.f32.gmra.mxu0 %v1269
    %v1291 = vpop.f32.mrf.mxu0
    %v1292 = vadd.f32 %v224, %v1291
    %1293 = vdwg.mxu0
    %v1294 = vsel %vm280, %v1266, -inf
    %1295 = vmax.xlane.f32.xlu0 %v1294
    %v1296 = vpop.xlane.xlu0 %1295
    %v1297 = vsel %vm280, %v1292, -inf
    %1298 = vmax.xlane.f32.xlu0 %v1297
    %v1299 = vpop.xlane.xlu0 %1298
    %v1300 = vsub.f32 %v1266, %v1296
    %v1301 = vsub.f32 %v1292, %v1299
    %v1302 = vmul.f32 %v1300, 1.442695
    %v1303 = vpow.pop %v1302
    %v1304 = vmul.f32 %v1301, 1.442695
    %v1305 = vpow.pop %v1304
    %v1306 = vsel %vm280, %v1303, 0.0
    %1307 = vadd.xlane.f32.xlu0 %v1306
    %v1308 = vpop.xlane.xlu0 %1307
    %v1309 = vsel %vm280, %v1305, 0.0
    %1310 = vadd.xlane.f32.xlu0 %v1309
    %v1311 = vpop.xlane.xlu0 %1310
    %v1312 = vrcp.pop %v1308
    %v1313 = vrcp.pop %v1311
    %v1314 = vmul.f32 %v1303, %v1312
    %v1315 = vmul.f32 %v1305, %v1313
    %v1317 = vsel %vm280, %v1314, 0
    %1319 = vmatpush.msra.mxu0 0.0
    %1320 = vmatpush.msra.mxu0 0.0
    %1321 = vmatpush.msra.mxu0 0.0
    %1322 = vmatpush.msra.mxu0 0.0
    %1323 = vmatpush.msra.mxu0 0.0
    %1324 = vmatpush.msra.mxu0 0.0
    %1325 = vmatpush.msra.mxu0 0.0
    %1326 = vmatpush.msra.mxu0 0.0
    %1327 = vmatpush.msra.mxu0 0.0
    %1328 = vmatpush.msra.mxu0 0.0
    %1329 = vmatpush.msra.mxu0 0.0
    %1330 = vmatpush.msra.mxu0 0.0
    %1331 = vmatpush.msra.mxu0 0.0
    %1332 = vmatpush.msra.mxu0 0.0
    %1333 = vmatpush.msra.mxu0 0.0
    %1334 = vmatpush.msra.mxu0 %v1237
    %1335 = vmatmul.f32.gmra.mxu0 %v1317
    %v1336 = vpop.f32.mrf.mxu0
    %v1337 = vadd.f32 0.0, %v1336
    %1338 = vdwg.mxu0
    %v1340 = vsel %vm280, %v1315, 0
    %1342 = vmatpush.msra.mxu0 0.0
    %1343 = vmatpush.msra.mxu0 0.0
    %1344 = vmatpush.msra.mxu0 0.0
    %1345 = vmatpush.msra.mxu0 0.0
    %1346 = vmatpush.msra.mxu0 0.0
    %1347 = vmatpush.msra.mxu0 0.0
    %1348 = vmatpush.msra.mxu0 0.0
    %1349 = vmatpush.msra.mxu0 0.0
    %1350 = vmatpush.msra.mxu0 0.0
    %1351 = vmatpush.msra.mxu0 0.0
    %1352 = vmatpush.msra.mxu0 0.0
    %1353 = vmatpush.msra.mxu0 0.0
    %1354 = vmatpush.msra.mxu0 0.0
    %1355 = vmatpush.msra.mxu0 0.0
    %1356 = vmatpush.msra.mxu0 0.0
    %1357 = vmatpush.msra.mxu0 %v1240
    %1358 = vmatmul.f32.gmra.mxu0 %v1340
    %v1359 = vpop.f32.mrf.mxu0
    %v1360 = vadd.f32 0.0, %v1359
    %1361 = vdwg.mxu0
    %s1362 = scalar_lea.vmem %s5, 96
    %v1363 = vld [vmem:[%s1362] sm:$0xff]
    %v1364 = vld [vmem:[%s1362 + $0x8] sm:$0xff]
    %v1365 = vld [vmem:[%s1362 + $0x10] sm:$0xff]
    %v1366 = vld [vmem:[%s1362 + $0x18] sm:$0xff]
    %v1368 = vsel %vm227, %v1337, 0
    %v1371 = vsel %vm227, %v1360, 0
    %1373 = vmatpush.msra.mxu0 0.0
    %1374 = vmatpush.msra.mxu0 0.0
    %1375 = vmatpush.msra.mxu0 0.0
    %1376 = vmatpush.msra.mxu0 0.0
    %1377 = vmatpush.msra.mxu0 0.0
    %1378 = vmatpush.msra.mxu0 0.0
    %1379 = vmatpush.msra.mxu0 0.0
    %1380 = vmatpush.msra.mxu0 0.0
    %1381 = vmatpush.msra.mxu0 0.0
    %1382 = vmatpush.msra.mxu0 0.0
    %1383 = vmatpush.msra.mxu0 0.0
    %1384 = vmatpush.msra.mxu0 0.0
    %1385 = vmatpush.msra.mxu0 %v1366
    %1386 = vmatpush.msra.mxu0 %v1365
    %1387 = vmatpush.msra.mxu0 %v1364
    %1388 = vmatpush.msra.mxu0 %v1363
    %1389 = vmatmul.f32.gmra.mxu0 %v1368
    %v1390 = vpop.f32.mrf.mxu0
    %v1391 = vadd.f32 0.0, %v1390
    %1392 = vmatmul.f32.gmra.mxu0 %v1371
    %v1393 = vpop.f32.mrf.mxu0
    %v1394 = vadd.f32 0.0, %v1393
    %1395 = vdwg.mxu0
    %v1396 = vadd.f32 %v1129, %v1391
    %v1397 = vadd.f32 %v1130, %v1394
    %v1398 = vadd.f32 %v853, %v1396
    %v1399 = vadd.f32 %v854, %v1397
    %v1400 = vsel %vm45, %v1398, 0.0
    %1401 = vadd.xlane.f32.xlu0 %v1400
    %v1402 = vpop.xlane.xlu0 %1401
    %v1403 = vsel %vm45, %v1399, 0.0
    %1404 = vadd.xlane.f32.xlu0 %v1403
    %v1405 = vpop.xlane.xlu0 %1404
    %v1406 = vmul.f32 %v1402, %v58
    %v1407 = vmul.f32 %v1405, %v58
    %v1408 = vsub.f32 %v1398, %v1406
    %v1409 = vsub.f32 %v1399, %v1407
    %v1410 = vmul.f32 %v1408, %v1408
    %v1411 = vmul.f32 %v1409, %v1409
    %v1412 = vsel %vm45, %v1410, 0.0
    %1413 = vadd.xlane.f32.xlu0 %v1412
    %v1414 = vpop.xlane.xlu0 %1413
    %v1415 = vsel %vm45, %v1411, 0.0
    %1416 = vadd.xlane.f32.xlu0 %v1415
    %v1417 = vpop.xlane.xlu0 %1416
    %v1418 = vmul.f32 %v1414, %v58
    %v1419 = vmul.f32 %v1417, %v58
    %v1420 = vadd.f32 %v1418, 1e-12
    %v1421 = vadd.f32 %v1419, 1e-12
    %v1422 = vrsqrt.pop %v1420
    %v1423 = vmul.f32 %v1422, %v1420
    %v1424 = vmul.f32 %v1423, %v1422
    %v1425 = vmul.f32 0.5, %v1424
    %v1426 = vsub.f32 1.5, %v1425
    %v1427 = vmul.f32 %v1422, %v1426
    %vm1428 = vweird.f32 %v1420
    %vm1429 = vweird.f32 %v1422
    %vm1430 = vmor %vm1428, %vm1429
    %v1431 = vsel %vm1430, %v1422, %v1427
    %v1432 = vrsqrt.pop %v1421
    %v1433 = vmul.f32 %v1432, %v1421
    %v1434 = vmul.f32 %v1433, %v1432
    %v1435 = vmul.f32 0.5, %v1434
    %v1436 = vsub.f32 1.5, %v1435
    %v1437 = vmul.f32 %v1432, %v1436
    %vm1438 = vweird.f32 %v1421
    %vm1439 = vweird.f32 %v1432
    %vm1440 = vmor %vm1438, %vm1439
    %v1441 = vsel %vm1440, %v1432, %v1437
    %v1442 = vmul.f32 %v1408, %v1431
    %v1443 = vmul.f32 %v1409, %v1441
    %v1444 = vperm.slane %v856, 1
    %v1445 = vmul.f32 %v1442, %v1444
    %v1446 = vmul.f32 %v1443, %v1444
    %v1447 = vperm.slane %v856, 2
    %v1448 = vadd.f32 %v1445, %v1447
    %v1449 = vadd.f32 %v1446, %v1447
    %s1450 = scalar_lea.vmem %s7, 64
    %v1451 = vld [vmem:[%s1450] sm:$0xff]
    %v1452 = vld [vmem:[%s1450 + $0x8] sm:$0xff]
    %v1453 = vld [vmem:[%s1450 + $0x10] sm:$0xff]
    %v1454 = vld [vmem:[%s1450 + $0x18] sm:$0xff]
    %v1455 = vld [vmem:[%s1450 + $0x20] sm:$0xff]
    %v1456 = vld [vmem:[%s1450 + $0x28] sm:$0xff]
    %v1457 = vld [vmem:[%s1450 + $0x30] sm:$0xff]
    %v1458 = vld [vmem:[%s1450 + $0x38] sm:$0xff]
    %s1459 = scalar_lea.vmem %s8, 1
    %v1460 = vld [vmem:[%s1459] sm:$0x1]
    %v1462 = vperm.slane %v1460, 0
    %v1465 = vsel %vm45, %v1448, 0
    %v1468 = vsel %vm45, %v1449, 0
    %1470 = vmatpush.msra.mxu0 0.0
    %1471 = vmatpush.msra.mxu0 0.0
    %1472 = vmatpush.msra.mxu0 0.0
    %1473 = vmatpush.msra.mxu0 0.0
    %1474 = vmatpush.msra.mxu0 0.0
    %1475 = vmatpush.msra.mxu0 0.0
    %1476 = vmatpush.msra.mxu0 0.0
    %1477 = vmatpush.msra.mxu0 0.0
    %1478 = vmatpush.msra.mxu0 %v1458
    %1479 = vmatpush.msra.mxu0 %v1457
    %1480 = vmatpush.msra.mxu0 %v1456
    %1481 = vmatpush.msra.mxu0 %v1455
    %1482 = vmatpush.msra.mxu0 %v1454
    %1483 = vmatpush.msra.mxu0 %v1453
    %1484 = vmatpush.msra.mxu0 %v1452
    %1485 = vmatpush.msra.mxu0 %v1451
    %1486 = vmatmul.f32.gmra.mxu0 %v1465
    %v1487 = vpop.f32.mrf.mxu0
    %v1488 = vadd.f32 %v1462, %v1487
    %1489 = vmatmul.f32.gmra.mxu0 %v1468
    %v1490 = vpop.f32.mrf.mxu0
    %v1491 = vadd.f32 %v1462, %v1490
    %1492 = vdwg.mxu0
    %v1493 = vmul.f32 %v1488, 0.5
    %v1494 = vmul.f32 %v1491, 0.5
    %v1495 = vmul.f32 %v1488, 0.044715
    %v1496 = vmul.f32 %v1491, 0.044715
    %v1497 = vmul.f32 %v1495, %v1488
    %v1498 = vmul.f32 %v1496, %v1491
    %v1499 = vmul.f32 %v1497, %v1488
    %v1500 = vmul.f32 %v1498, %v1491
    %v1501 = vadd.f32 %v1488, %v1499
    %v1502 = vadd.f32 %v1491, %v1500
    %v1503 = vmul.f32 %v1501, 0.7978846
    %v1504 = vmul.f32 %v1502, 0.7978846
    %v1505 = vtanh.pop %v1503
    %v1506 = vtanh.pop %v1504
    %v1507 = vadd.f32 %v1505, 1.0
    %v1508 = vadd.f32 %v1506, 1.0
    %v1509 = vmul.f32 %v1493, %v1507
    %v1510 = vmul.f32 %v1494, %v1508
    %s1511 = scalar_lea.vmem %s9, 128
    %v1512 = vld [vmem:[%s1511] sm:$0xff]
    %v1513 = vld [vmem:[%s1511 + $0x8] sm:$0xff]
    %v1514 = vld [vmem:[%s1511 + $0x10] sm:$0xff]
    %v1515 = vld [vmem:[%s1511 + $0x18] sm:$0xff]
    %v1516 = vld [vmem:[%s1511 + $0x20] sm:$0xff]
    %v1517 = vld [vmem:[%s1511 + $0x28] sm:$0xff]
    %v1518 = vld [vmem:[%s1511 + $0x30] sm:$0xff]
    %v1519 = vld [vmem:[%s1511 + $0x38] sm:$0xff]
    %v1520 = vld [vmem:[%s1511 + $0x40] sm:$0xff]
    %v1521 = vld [vmem:[%s1511 + $0x48] sm:$0xff]
    %v1522 = vld [vmem:[%s1511 + $0x50] sm:$0xff]
    %v1523 = vld [vmem:[%s1511 + $0x58] sm:$0xff]
    %v1524 = vld [vmem:[%s1511 + $0x60] sm:$0xff]
    %v1525 = vld [vmem:[%s1511 + $0x68] sm:$0xff]
    %v1526 = vld [vmem:[%s1511 + $0x70] sm:$0xff]
    %v1527 = vld [vmem:[%s1511 + $0x78] sm:$0xff]
    %v1528 = vperm.slane %v856, 3
    %1529 = vmatpush.msra.mxu0 %v1527
    %1530 = vmatpush.msra.mxu0 %v1526
    %1531 = vmatpush.msra.mxu0 %v1525
    %1532 = vmatpush.msra.mxu0 %v1524
    %1533 = vmatpush.msra.mxu0 %v1523
    %1534 = vmatpush.msra.mxu0 %v1522
    %1535 = vmatpush.msra.mxu0 %v1521
    %1536 = vmatpush.msra.mxu0 %v1520
    %1537 = vmatpush.msra.mxu0 %v1519
    %1538 = vmatpush.msra.mxu0 %v1518
    %1539 = vmatpush.msra.mxu0 %v1517
    %1540 = vmatpush.msra.mxu0 %v1516
    %1541 = vmatpush.msra.mxu0 %v1515
    %1542 = vmatpush.msra.mxu0 %v1514
    %1543 = vmatpush.msra.mxu0 %v1513
    %1544 = vmatpush.msra.mxu0 %v1512
    %1545 = vmatmul.f32.gmra.mxu0 %v1509
    %v1546 = vpop.f32.mrf.mxu0
    %v1547 = vadd.f32 %v1528, %v1546
    %1548 = vmatmul.f32.gmra.mxu0 %v1510
    %v1549 = vpop.f32.mrf.mxu0
    %v1550 = vadd.f32 %v1528, %v1549
    %1551 = vdwg.mxu0
    %v1552 = vadd.f32 %v1448, %v1547
    %v1553 = vadd.f32 %v1449, %v1550
    %v1554 = vsel %vm45, %v1552, 0.0
    %1555 = vadd.xlane.f32.xlu0 %v1554
    %v1556 = vpop.xlane.xlu0 %1555
    %v1557 = vsel %vm45, %v1553, 0.0
    %1558 = vadd.xlane.f32.xlu0 %v1557
    %v1559 = vpop.xlane.xlu0 %1558
    %v1560 = vmul.f32 %v1556, %v58
    %v1561 = vmul.f32 %v1559, %v58
    %v1562 = vsub.f32 %v1552, %v1560
    %v1563 = vsub.f32 %v1553, %v1561
    %v1564 = vmul.f32 %v1562, %v1562
    %v1565 = vmul.f32 %v1563, %v1563
    %v1566 = vsel %vm45, %v1564, 0.0
    %1567 = vadd.xlane.f32.xlu0 %v1566
    %v1568 = vpop.xlane.xlu0 %1567
    %v1569 = vsel %vm45, %v1565, 0.0
    %1570 = vadd.xlane.f32.xlu0 %v1569
    %v1571 = vpop.xlane.xlu0 %1570
    %v1572 = vmul.f32 %v1568, %v58
    %v1573 = vmul.f32 %v1571, %v58
    %v1574 = vadd.f32 %v1572, 1e-12
    %v1575 = vadd.f32 %v1573, 1e-12
    %v1576 = vrsqrt.pop %v1574
    %v1577 = vmul.f32 %v1576, %v1574
    %v1578 = vmul.f32 %v1577, %v1576
    %v1579 = vmul.f32 0.5, %v1578
    %v1580 = vsub.f32 1.5, %v1579
    %v1581 = vmul.f32 %v1576, %v1580
    %vm1582 = vweird.f32 %v1574
    %vm1583 = vweird.f32 %v1576
    %vm1584 = vmor %vm1582, %vm1583
    %v1585 = vsel %vm1584, %v1576, %v1581
    %v1586 = vrsqrt.pop %v1575
    %v1587 = vmul.f32 %v1586, %v1575
    %v1588 = vmul.f32 %v1587, %v1586
    %v1589 = vmul.f32 0.5, %v1588
    %v1590 = vsub.f32 1.5, %v1589
    %v1591 = vmul.f32 %v1586, %v1590
    %vm1592 = vweird.f32 %v1575
    %vm1593 = vweird.f32 %v1586
    %vm1594 = vmor %vm1592, %vm1593
    %v1595 = vsel %vm1594, %v1586, %v1591
    %v1596 = vmul.f32 %v1562, %v1585
    %v1597 = vmul.f32 %v1563, %v1595
    %v1598 = vperm.slane %v856, 4
    %v1599 = vmul.f32 %v1596, %v1598
    %v1600 = vmul.f32 %v1597, %v1598
    %v1601 = vperm.slane %v856, 5
    %v1602 = vadd.f32 %v1599, %v1601
    %v1603 = vadd.f32 %v1600, %v1601
    %v1605 = vrot.slane %v1603, 7
    %vm1607 = vcmask 1040384
    %v1608 = vsel %vm1607, %v1602, %v1605
    %v1609 = vld [vmem:[%s10] sm:$0xff]
    %v1610 = vld [vmem:[%s10 + $0x8] sm:$0xff]
    %v1611 = vld [vmem:[%s10 + $0x10] sm:$0xff]
    %v1612 = vld [vmem:[%s10 + $0x18] sm:$0xff]
    %v1613 = vld [vmem:[%s10 + $0x20] sm:$0xff]
    %v1614 = vld [vmem:[%s10 + $0x28] sm:$0xff]
    %v1615 = vld [vmem:[%s10 + $0x30] sm:$0xff]
    %v1616 = vld [vmem:[%s10 + $0x38] sm:$0xff]
    %v1617 = vld [vmem:[%s11] sm:$0x1]
    %v1619 = vperm.slane %v1617, 0
    %v1622 = vsel %vm45, %v1608, 0
    %1624 = vmatpush.msra.mxu0 0.0
    %1625 = vmatpush.msra.mxu0 0.0
    %1626 = vmatpush.msra.mxu0 0.0
    %1627 = vmatpush.msra.mxu0 0.0
    %1628 = vmatpush.msra.mxu0 0.0
    %1629 = vmatpush.msra.mxu0 0.0
    %1630 = vmatpush.msra.mxu0 0.0
    %1631 = vmatpush.msra.mxu0 0.0
    %1632 = vmatpush.msra.mxu0 %v1616
    %1633 = vmatpush.msra.mxu0 %v1615
    %1634 = vmatpush.msra.mxu0 %v1614
    %1635 = vmatpush.msra.mxu0 %v1613
    %1636 = vmatpush.msra.mxu0 %v1612
    %1637 = vmatpush.msra.mxu0 %v1611
    %1638 = vmatpush.msra.mxu0 %v1610
    %1639 = vmatpush.msra.mxu0 %v1609
    %1640 = vmatmul.f32.gmra.mxu0 %v1622
    %v1641 = vpop.f32.mrf.mxu0
    %v1642 = vadd.f32 %v1619, %v1641
    %1643 = vdwg.mxu0
    %vm1644 = vcmask 9216
    %1645 = vst.msk [vmem:[#allocation2] sm:$0x3] %vm1644, %v1642
    // Predicated region
    $region50: #{bert_classifier_forward.1} parent=1 // pred_check
      _
    $region51: #{bert_classifier_forward.1} parent=1 // pred_check_branch
      %1647 = sbr.rel (0) target = $region53
    $region52: #{bert_classifier_forward.1} parent=1 // pred_region
      %1649 = vsyncadd [#allocation3], 0
      %s1651 = sshll.u32 [#allocation2], 4
      %s1652 = int_to_ptr.vmem [resolvable:$true] %s1651
      %s1653 = sshll.u32 %s12, 4
      %s1654 = int_to_ptr.hbm [resolvable:$true] %s1653
      %1656 = dma.vmem_to_hbm [thread:$0]  %s1652, 32, %s1654, [#allocation3]
    $region53: #{bert_classifier_forward.1} parent=1 // pred_fallthru
      _
    // Predicated region
    $region54: #{bert_classifier_forward.1} parent=1 // pred_check
      _
    $region55: #{bert_classifier_forward.1} parent=1 // pred_check_branch
      %1658 = sbr.rel (0) target = $region57
    $region56: #{bert_classifier_forward.1} parent=1 // pred_region
      %1660 = dma.done [#allocation3], 32
    $region57: #{bert_classifier_forward.1} parent=1 // pred_fallthru
      _
    %1661 = vsyncpa [#allocation3], 1

</llo_original>
